<compile_context>
chip_gen: v6e
topology: v6e:2x2x1
jax: 0.10.0
libtpu: 0.0.40
codegen_flags: <defaults>
</compile_context>

<pallas_src>
import functools
import math

import jax
import jax.numpy as jnp
from jax.experimental import pallas as pl
from jax.experimental.pallas import tpu as pltpu

EPS = 1e-10


# ------------------------------ small helpers -------------------------------

def _round_up(x, m):
    return ((x + m - 1) // m) * m


def _pad_axis(x, axis, target, value=0):
    pad = target - x.shape[axis]
    if pad <= 0:
        return x
    widths = [(0, 0)] * x.ndim
    widths[axis] = (0, pad)
    return jnp.pad(x, widths, constant_values=value)


def _choose_tile(n, max_tile=512):
    """Owner tile: multiple of 8, <= max_tile, and (when there is enough work)
    at least two grid steps so v7x can shard the parallel grid over 2 TCs."""
    n8 = _round_up(max(n, 1), 8)
    if n8 <= 8:
        return 8
    target = min(max_tile, _round_up(-(-n8 // 2), 8))
    n_grid = -(-n8 // target)
    return _round_up(-(-n8 // n_grid), 8)


# ----------------------------- Pallas kernels ------------------------------

def _item_agg_kernel(ids_ref, rid_ref, qp_ref, p_ref, wm_ref, wv_ref, out_ref,
                     *, L, D, R):
    """Item attention + aggregation for TB owners, fully lane-dense (F = L*D)."""
    F, LR = L * D, L * R
    f32 = jnp.float32

    o = 0
    wg2_bd = wm_ref[o:o + F, 0:F];    o += F      # block-diag g_v 2nd layer
    wa1x_bd = wm_ref[o:o + F, 0:F];   o += F      # block-diag att layer (x part)
    wa2_cols = wm_ref[o:o + F, 0:L];  o += F      # per-slot logit columns
    slot_sum = wm_ref[o:o + F, 0:D];  o += F      # sum-over-item-slots matrix
    rate_tab = wm_ref[o:o + LR, 0:F]; o += LR     # per-slot rating lookup table
    rid_rep_m = wm_ref[o:o + L, 0:LR]; o += L     # rid lane-repeat matrix
    lane_exp = wm_ref[o:o + L, 0:F];  o += L      # mask/alpha lane-expander
    wa1p_t = wm_ref[o:o + D, 0:F];    o += D      # wa1p tiled across slots
    wag = wm_ref[o:o + D, 0:D];       o += D      # aggre_items

    bg1_t = wv_ref[0:1, 0:F]
    bg2_t = wv_ref[1:2, 0:F]
    ba1_t = wv_ref[2:3, 0:F]
    rpat = wv_ref[3:4, 0:LR]
    bag = wv_ref[4:5, 0:D]
    ba2 = wv_ref[5:6, 0:1]

    ids = ids_ref[...]                                                   # (TB, L)
    mask = (ids > 0).astype(f32)                                         # (TB, L)
    rid_f = rid_ref[...].astype(f32)                                     # (TB, L)

    # Rating-embedding projection looked up in-kernel (no (N, L, D) HBM stream).
    rid_rep = jnp.dot(rid_f, rid_rep_m, preferred_element_type=f32)      # (TB, LR)
    onehot = (rid_rep == rpat).astype(f32)                               # (TB, LR)
    erp = jnp.dot(onehot, rate_tab, preferred_element_type=f32)          # (TB, F)

    # g_v MLP (item_emb @ wg1q is folded into the gathered qp stream).
    h1 = jnp.maximum(qp_ref[...] + erp + bg1_t, 0.0)                     # (TB, F)
    x = jnp.dot(h1, wg2_bd, preferred_element_type=f32) + bg2_t          # (TB, F)

    # user_items_att MLP.
    mask_d = jnp.dot(mask, lane_exp, preferred_element_type=f32)         # (TB, F)
    pp_t = jnp.dot(p_ref[...], wa1p_t, preferred_element_type=f32)       # (TB, F)
    a1 = jnp.maximum(jnp.dot(x, wa1x_bd, preferred_element_type=f32)
                     + mask_d * pp_t + ba1_t, 0.0)                       # (TB, F)
    logit = jnp.dot(a1, wa2_cols, preferred_element_type=f32) + ba2      # (TB, L)

    # Masked exp-normalisation (faithful to the torch module: no max-subtraction).
    # TODO(synk): unbounded logits could overflow exp; module semantics kept as-is.
    alpha = jnp.exp(logit) * mask
    denom = jnp.sum(alpha, axis=1, keepdims=True) + EPS
    alpha = alpha / denom                                                # (TB, L)

    alpha_d = jnp.dot(alpha, lane_exp, preferred_element_type=f32)       # (TB, F)
    agg = jnp.dot(alpha_d * x, slot_sum, preferred_element_type=f32)     # (TB, D)

    # aggre_items: Linear(D -> D) + ReLU.
    out_ref[...] = jnp.maximum(
        jnp.dot(agg, wag, preferred_element_type=f32) + bag, 0.0)


def _social_combine_kernel(nb_ref, hO_ref, pN_ref, hI_ref, wm_ref, wv_ref, out_ref,
                           *, U, D):
    """Social attention + aggregation fused with the 3-layer combine MLP (G = U*D)."""
    G = U * D
    f32 = jnp.float32

    o = 0
    wu1h_bd = wm_ref[o:o + G, 0:G];   o += G
    wu1p_bd = wm_ref[o:o + G, 0:G];   o += G
    wu2_cols = wm_ref[o:o + G, 0:U];  o += G
    slot_sum = wm_ref[o:o + G, 0:D];  o += G
    lane_exp = wm_ref[o:o + U, 0:G];  o += U
    wan = wm_ref[o:o + D, 0:D];       o += D
    c1a = wm_ref[o:o + D, 0:D];       o += D
    c1b = wm_ref[o:o + D, 0:D];       o += D
    c2 = wm_ref[o:o + D, 0:D];        o += D
    c3 = wm_ref[o:o + D, 0:D];        o += D

    bu1_t = wv_ref[0:1, 0:G]
    ban = wv_ref[1:2, 0:D]
    cb1 = wv_ref[2:3, 0:D]
    cb2 = wv_ref[3:4, 0:D]
    cb3 = wv_ref[4:5, 0:D]
    bu2 = wv_ref[5:6, 0:1]

    mask = (nb_ref[...] > 0).astype(f32)                                  # (TB, U)
    hO = hO_ref[...]                                                      # (TB, G)

    # user_users_att MLP (raw neighbour embeddings shared with the item kernel;
    # wu1p applied here as a block-diagonal matmul).
    b1 = jnp.maximum(jnp.dot(hO, wu1h_bd, preferred_element_type=f32)
                     + jnp.dot(pN_ref[...], wu1p_bd, preferred_element_type=f32)
                     + bu1_t, 0.0)                                        # (TB, G)
    logit = jnp.dot(b1, wu2_cols, preferred_element_type=f32) + bu2       # (TB, U)

    beta = jnp.exp(logit) * mask
    denom = jnp.sum(beta, axis=1, keepdims=True) + EPS
    beta = beta / denom                                                   # (TB, U)

    beta_d = jnp.dot(beta, lane_exp, preferred_element_type=f32)          # (TB, G)
    agg = jnp.dot(beta_d * hO, slot_sum, preferred_element_type=f32)      # (TB, D)
    h_iS = jnp.maximum(jnp.dot(agg, wan, preferred_element_type=f32) + ban, 0.0)

    # combine_mlp fused in the same kernel (h_iI / h_iS never touch HBM here).
    hI = hI_ref[...]
    hc1 = jnp.maximum(jnp.dot(hI, c1a, preferred_element_type=f32)
                      + jnp.dot(h_iS, c1b, preferred_element_type=f32) + cb1, 0.0)
    hc2 = jnp.maximum(jnp.dot(hc1, c2, preferred_element_type=f32) + cb2, 0.0)
    out_ref[...] = jnp.maximum(jnp.dot(hc2, c3, preferred_element_type=f32) + cb3, 0.0)


# ----------------------------- Pallas wrappers -----------------------------

_VMEM_LIMIT = 32 * 1024 * 1024


def _item_aggregation(ids, rid, qp, p, wm, wv, tile, L, D, R):
    N = ids.shape[0]
    F = L * D
    kern = functools.partial(_item_agg_kernel, L=L, D=D, R=R)
    return pl.pallas_call(
        kern,
        out_shape=jax.ShapeDtypeStruct((N, D), jnp.float32),
        grid=(N // tile,),
        in_specs=[
            pl.BlockSpec((tile, L), lambda i: (i, 0)),
            pl.BlockSpec((tile, L), lambda i: (i, 0)),
            pl.BlockSpec((tile, F), lambda i: (i, 0)),
            pl.BlockSpec((tile, D), lambda i: (i, 0)),
            pl.BlockSpec(wm.shape, lambda i: (0, 0)),
            pl.BlockSpec(wv.shape, lambda i: (0, 0)),
        ],
        out_specs=pl.BlockSpec((tile, D), lambda i: (i, 0)),
        compiler_params=pltpu.CompilerParams(
            dimension_semantics=("parallel",),
            vmem_limit_bytes=_VMEM_LIMIT),
    )(ids, rid, qp, p, wm, wv)


def _social_combine(nb, hO, pN, hI, wm, wv, tile, U, D):
    B = nb.shape[0]
    G = U * D
    kern = functools.partial(_social_combine_kernel, U=U, D=D)
    return pl.pallas_call(
        kern,
        out_shape=jax.ShapeDtypeStruct((B, D), jnp.float32),
        grid=(B // tile,),
        in_specs=[
            pl.BlockSpec((tile, U), lambda i: (i, 0)),
            pl.BlockSpec((tile, G), lambda i: (i, 0)),
            pl.BlockSpec((tile, G), lambda i: (i, 0)),
            pl.BlockSpec((tile, D), lambda i: (i, 0)),
            pl.BlockSpec(wm.shape, lambda i: (0, 0)),
            pl.BlockSpec(wv.shape, lambda i: (0, 0)),
        ],
        out_specs=pl.BlockSpec((tile, D), lambda i: (i, 0)),
        compiler_params=pltpu.CompilerParams(
            dimension_semantics=("parallel",),
            vmem_limit_bytes=_VMEM_LIMIT),
    )(nb, hO, pN, hI, wm, wv)


# ------------------------------ weight packing ------------------------------

def _pack_item_weights(P, rate_emb, d, L, R):
    F, LR = L * d, L * R
    SW = max(F, LR)
    eyeL = jnp.eye(L, dtype=jnp.float32)
    eyeD = jnp.eye(d, dtype=jnp.float32)
    rate_proj = _pad_axis(rate_emb @ P['wg1e'], 0, R)          # (R, d), wg1e folded

    def pc(x):
        return _pad_axis(x, 1, SW)

    wm = jnp.concatenate([
        pc(jnp.kron(eyeL, P['wg2'])),                                    # (F, F)
        pc(jnp.kron(eyeL, P['wa1x'])),                                   # (F, F)
        pc(jnp.kron(eyeL, P['wa2'].reshape(d, 1))),                      # (F, L)
        pc(jnp.kron(jnp.ones((L, 1), jnp.float32), eyeD)),               # (F, d)
        pc(jnp.kron(eyeL, rate_proj)),                                   # (LR, F)
        pc(jnp.kron(eyeL, jnp.ones((1, R), jnp.float32))),               # (L, LR)
        pc(jnp.kron(eyeL, jnp.ones((1, d), jnp.float32))),               # (L, F)
        pc(jnp.kron(jnp.ones((1, L), jnp.float32), P['wa1p'])),          # (d, F)
        pc(P['wag']),                                                    # (d, d)
    ], axis=0)

    wv = jnp.concatenate([
        pc(jnp.tile(P['bg1'], (1, L))),
        pc(jnp.tile(P['bg2'], (1, L))),
        pc(jnp.tile(P['ba1'], (1, L))),
        pc(jnp.tile(jnp.arange(R, dtype=jnp.float32)[None, :], (1, L))),
        pc(P['bag']),
        pc(P['ba2']),
    ], axis=0)
    wv = _pad_axis(wv, 0, 8)
    return wm, wv


def _pack_social_weights(P, d, U):
    G = U * d
    eyeU = jnp.eye(U, dtype=jnp.float32)
    eyeD = jnp.eye(d, dtype=jnp.float32)

    def pc(x):
        return _pad_axis(x, 1, G)

    wm = jnp.concatenate([
        pc(jnp.kron(eyeU, P['wu1h'])),
        pc(jnp.kron(eyeU, P['wu1p'])),
        pc(jnp.kron(eyeU, P['wu2'].reshape(d, 1))),
        pc(jnp.kron(jnp.ones((U, 1), jnp.float32), eyeD)),
        pc(jnp.kron(eyeU, jnp.ones((1, d), jnp.float32))),
        pc(P['wan']),
        pc(P['c1a']),
        pc(P['c1b']),
        pc(P['c2']),
        pc(P['c3']),
    ], axis=0)

    wv = jnp.concatenate([
        pc(jnp.tile(P['bu1'], (1, U))),
        pc(P['ban']),
        pc(P['cb1']),
        pc(P['cb2']),
        pc(P['cb3']),
        pc(P['bu2']),
    ], axis=0)
    wv = _pad_axis(wv, 0, 8)
    return wm, wv


# --------------------------- full forward (glue) ---------------------------

def user_factor_forward(P, user_emb, item_emb, rate_emb,
                        uids, u_item_pad, u_user_pad, u_user_item_pad,
                        max_tile=512):
    d = user_emb.shape[1]
    B, I, _ = u_item_pad.shape
    U = u_user_pad.shape[1]
    I2 = u_user_item_pad.shape[2]
    n_rates = rate_emb.shape[0]

    # Pick item/neighbour padded counts so that L*d and U_pad*d are multiples
    # of 128 (lane-dense streams), and >= the sublane multiple of 8.
    lane_mult = max(8, 128 // math.gcd(128, d))
    L = _round_up(max(I, I2, 1), lane_mult)
    U_pad = _round_up(max(U, 1), lane_mult)
    R = _round_up(n_rates, 8)
    F = L * d
    G = U_pad * d

    # --------- merged owner axis: B users followed by B*U_pad neighbours ----
    ids_u = _pad_axis(u_item_pad[:, :, 0], 1, L)
    rid_u = _pad_axis(u_item_pad[:, :, 1], 1, L)
    nb_ids = _pad_axis(u_user_pad, 1, U_pad)                           # (B, U_pad)
    ids_s = _pad_axis(_pad_axis(u_user_item_pad[..., 0], 2, L), 1, U_pad)
    rid_s = _pad_axis(_pad_axis(u_user_item_pad[..., 1], 2, L), 1, U_pad)

    ids_all = jnp.concatenate([ids_u, ids_s.reshape(B * U_pad, L)], axis=0)
    rid_all = jnp.concatenate([rid_u, rid_s.reshape(B * U_pad, L)], axis=0)
    owners = jnp.concatenate([uids.astype(jnp.int32), nb_ids.reshape(-1)], axis=0)
    p_all = user_emb[owners]                                           # (N, d) raw, shared
    N = B + B * U_pad

    # Pre-projected item table (wg1q folded into the gather); lane-dense stream.
    item_proj = item_emb @ P['wg1q']                                   # (n_items, d)
    qp_all = item_proj[ids_all].reshape(N, F)                          # (N, F)

    TB = _choose_tile(N, max_tile)
    N_pad = _round_up(N, TB)
    ids_pad = _pad_axis(ids_all, 0, N_pad)
    rid_pad = _pad_axis(rid_all, 0, N_pad)
    qp_pad = _pad_axis(qp_all, 0, N_pad)
    p_pad = _pad_axis(p_all, 0, N_pad)

    wm_i, wv_i = _pack_item_weights(P, rate_emb, d, L, R)
    h_all = _item_aggregation(ids_pad, rid_pad, qp_pad, p_pad, wm_i, wv_i,
                              TB, L, d, R)                             # (N_pad, d)

    h_iI = h_all[:B]                                                   # (B, d)
    hO_dense = h_all[B:N].reshape(B, G)                                # (B, U_pad*d)
    pN_dense = p_all[B:N].reshape(B, G)                                # reuse same gather

    # ------------------- social aggregation + combine MLP -------------------
    TBS = _choose_tile(B, max_tile)
    B_pad = _round_up(B, TBS)
    nb_pad = _pad_axis(nb_ids, 0, B_pad)
    hO_pad = _pad_axis(hO_dense, 0, B_pad)
    pN_pad = _pad_axis(pN_dense, 0, B_pad)
    hI_pad = _pad_axis(h_iI, 0, B_pad)

    wm_s, wv_s = _pack_social_weights(P, d, U_pad)
    h_i = _social_combine(nb_pad, hO_pad, pN_pad, hI_pad, wm_s, wv_s, TBS, U_pad, d)
    return h_i[:B]                                                     # (B, d)


# ----------------------------- pure-JAX reference --------------------------

def reference_forward(P, user_emb, item_emb, rate_emb,
                      uids, u_item_pad, u_user_pad, u_user_item_pad):
    relu = jax.nn.relu

    def g_v(q, er):
        h = relu(q @ P['wg1q'] + er @ P['wg1e'] + P['bg1'])
        return h @ P['wg2'] + P['bg2']

    def att_item(x, p):
        h = relu(x @ P['wa1x'] + p @ P['wa1p'] + P['ba1'])
        return jnp.sum(h * P['wa2'], axis=-1, keepdims=True) + P['ba2']

    def att_user(x, p):
        h = relu(x @ P['wu1h'] + p @ P['wu1p'] + P['bu1'])
        return jnp.sum(h * P['wu2'], axis=-1, keepdims=True) + P['bu2']

    q_a = item_emb[u_item_pad[:, :, 0]]
    er = rate_emb[u_item_pad[:, :, 1]]
    mask_u = (u_item_pad[:, :, 0] > 0).astype(jnp.float32)
    x_ia = g_v(q_a, er)
    p_i = mask_u[..., None] * user_emb[uids][:, None, :]
    alpha = att_item(x_ia, p_i)[..., 0]
    alpha = jnp.exp(alpha) * mask_u
    alpha = alpha / (jnp.sum(alpha, axis=1, keepdims=True) + EPS)
    h_iI = relu(jnp.sum(alpha[..., None] * x_ia, axis=1) @ P['wag'] + P['bag'])

    q_s = item_emb[u_user_item_pad[..., 0]]
    er_s = rate_emb[u_user_item_pad[..., 1]]
    mask_s = (u_user_item_pad[..., 0] > 0).astype(jnp.float32)
    x_ia_s = g_v(q_s, er_s)
    p_i_s = mask_s[..., None] * user_emb[u_user_pad][:, :, None, :]
    alpha_s = att_item(x_ia_s, p_i_s)[..., 0]
    alpha_s = jnp.exp(alpha_s) * mask_s
    alpha_s = alpha_s / (jnp.sum(alpha_s, axis=2, keepdims=True) + EPS)
    h_oI = relu(jnp.sum(alpha_s[..., None] * x_ia_s, axis=2) @ P['wag'] + P['bag'])

    mask_su = (u_user_pad > 0).astype(jnp.float32)
    beta = att_user(h_oI, user_emb[u_user_pad])[..., 0]
    beta = jnp.exp(beta) * mask_su
    beta = beta / (jnp.sum(beta, axis=1, keepdims=True) + EPS)
    h_iS = relu(jnp.sum(beta[..., None] * h_oI, axis=1) @ P['wan'] + P['ban'])

    h1 = relu(h_iI @ P['c1a'] + h_iS @ P['c1b'] + P['cb1'])
    h2 = relu(h1 @ P['c2'] + P['cb2'])
    h3 = relu(h2 @ P['c3'] + P['cb3'])
    return h3


# ------------------------------- parameters --------------------------------

def init_params(key, d):
    keys = jax.random.split(key, 10)

    def lin(k, fin, fout):
        kw, kb = jax.random.split(k)
        lim = 1.0 / (fin ** 0.5)
        W = jax.random.uniform(kw, (fin, fout), jnp.float32, -lim, lim)
        b = jax.random.uniform(kb, (1, fout), jnp.float32, -lim, lim)
        return W, b

    P = {}
    # g_v: Linear(2D, D) + ReLU + Linear(D, D)
    W, b = lin(keys[0], 2 * d, d); P['wg1q'], P['wg1e'], P['bg1'] = W[:d], W[d:], b
    W, b = lin(keys[1], d, d);     P['wg2'], P['bg2'] = W, b
    # user_items_att: Linear(2D, D) + ReLU + Linear(D, 1)
    W, b = lin(keys[2], 2 * d, d); P['wa1x'], P['wa1p'], P['ba1'] = W[:d], W[d:], b
    W, b = lin(keys[3], d, 1);     P['wa2'], P['ba2'] = W.T, b            # (1, D), (1, 1)
    # aggre_items: Linear(D, D) + ReLU
    W, b = lin(keys[4], d, d);     P['wag'], P['bag'] = W, b
    # user_users_att: Linear(2D, D) + ReLU + Linear(D, 1)
    W, b = lin(keys[5], 2 * d, d); P['wu1h'], P['wu1p'], P['bu1'] = W[:d], W[d:], b
    W, b = lin(keys[6], d, 1);     P['wu2'], P['bu2'] = W.T, b
    # aggre_neigbors: Linear(D, D) + ReLU
    W, b = lin(keys[7], d, d);     P['wan'], P['ban'] = W, b
    # combine_mlp: Linear(2D, D), Linear(D, D), Linear(D, D) (each + ReLU)
    W, b = lin(keys[8], 2 * d, d); P['c1a'], P['c1b'], P['cb1'] = W[:d], W[d:], b
    k9a, k9b = jax.random.split(keys[9])
    W, b = lin(k9a, d, d); P['c2'], P['cb2'] = W, b
    W, b = lin(k9b, d, d); P['c3'], P['cb3'] = W, b
    return P


# ---------------------------------- main ------------------------------------

if __name__ == "__main__":
    emb_dim = 16
    B, I, U, I2 = 2, 8, 4, 8
    n_users, n_items, n_rates = 20, 30, 6

    key = jax.random.PRNGKey(0)
    k_emb, k_par, k_idx = jax.random.split(key, 3)
    ku, ki, kr = jax.random.split(k_emb, 3)
    user_emb = jax.random.normal(ku, (n_users, emb_dim), jnp.float32)
    item_emb = jax.random.normal(ki, (n_items, emb_dim), jnp.float32)
    rate_emb = jax.random.normal(kr, (n_rates, emb_dim), jnp.float32)
    params = init_params(k_par, emb_dim)

    k1, k2, k3, k4, k5, k6 = jax.random.split(k_idx, 6)
    uids = jax.random.randint(k1, (B,), 1, n_users)
    u_item_pad = jnp.stack(
        [jax.random.randint(k2, (B, I), 0, n_items),      # item ids (0 = pad)
         jax.random.randint(k3, (B, I), 0, n_rates)],     # rating ids
        axis=-1).astype(jnp.int32)
    u_user_pad = jax.random.randint(k4, (B, U), 0, n_users).astype(jnp.int32)
    u_user_item_pad = jnp.stack(
        [jax.random.randint(k5, (B, U, I2), 0, n_items),
         jax.random.randint(k6, (B, U, I2), 0, n_rates)],
        axis=-1).astype(jnp.int32)

    h_i = user_factor_forward(params, user_emb, item_emb, rate_emb,
                              uids, u_item_pad, u_user_pad, u_user_item_pad)
    h_i = jax.block_until_ready(h_i)

    h_ref = reference_forward(params, user_emb, item_emb, rate_emb,
                              uids, u_item_pad, u_user_pad, u_user_item_pad)
    assert h_i.shape == (B, emb_dim)
    # Tolerance covers MXU-vs-XLA f32 matmul rounding differences.
    assert jnp.allclose(h_i, h_ref, rtol=1e-3, atol=1e-3), "mismatch vs JAX reference"

    print("KERNEL_OK")
</pallas_src>

<mosaic_0001>
module attributes {stable_mosaic.version = 11 : i64} {
  func.func @_item_agg_kernel(%arg0: i32, %arg1: memref<16x8xi32, #tpu.memory_space<vmem>>, %arg2: memref<16x8xi32, #tpu.memory_space<vmem>>, %arg3: memref<16x128xf32, #tpu.memory_space<vmem>>, %arg4: memref<16x16xf32, #tpu.memory_space<vmem>>, %arg5: memref<624x128xf32, #tpu.memory_space<vmem>>, %arg6: memref<8x128xf32, #tpu.memory_space<vmem>>, %arg7: memref<16x16xf32, #tpu.memory_space<vmem>>) attributes {dimension_semantics = [#tpu.dimension_semantics<parallel>], iteration_bounds = array<i64: 2>, scalar_prefetch = 0 : i64, scratch_operands = 0 : i64, tpu.core_type = #tpu.core_type<tc>, window_params = [{transform_indices = @transform_0, window_bounds = array<i64: 16, 8>}, {transform_indices = @transform_1, window_bounds = array<i64: 16, 8>}, {transform_indices = @transform_2, window_bounds = array<i64: 16, 128>}, {transform_indices = @transform_3, window_bounds = array<i64: 16, 16>}, {pipeline_mode = #tpu.pipeline_mode<synchronous>, transform_indices = @transform_4, window_bounds = array<i64: 624, 128>}, {pipeline_mode = #tpu.pipeline_mode<synchronous>, transform_indices = @transform_5, window_bounds = array<i64: 8, 128>}, {transform_indices = @transform_6, window_bounds = array<i64: 16, 16>}]} {
    %c0 = arith.constant 0 : index
    %c0_0 = arith.constant 0 : index
    %0 = vector.load %arg5[%c0, %c0_0] : memref<624x128xf32, #tpu.memory_space<vmem>>, vector<128x128xf32>
    %c128 = arith.constant 128 : index
    %c0_1 = arith.constant 0 : index
    %1 = vector.load %arg5[%c128, %c0_1] : memref<624x128xf32, #tpu.memory_space<vmem>>, vector<128x128xf32>
    %c256 = arith.constant 256 : index
    %c0_2 = arith.constant 0 : index
    %2 = vector.load %arg5[%c256, %c0_2] : memref<624x128xf32, #tpu.memory_space<vmem>>, vector<128x8xf32>
    %c384 = arith.constant 384 : index
    %c0_3 = arith.constant 0 : index
    %3 = vector.load %arg5[%c384, %c0_3] : memref<624x128xf32, #tpu.memory_space<vmem>>, vector<128x16xf32>
    %c512 = arith.constant 512 : index
    %c0_4 = arith.constant 0 : index
    %4 = vector.load %arg5[%c512, %c0_4] : memref<624x128xf32, #tpu.memory_space<vmem>>, vector<64x128xf32>
    %c576 = arith.constant 576 : index
    %c0_5 = arith.constant 0 : index
    %5 = vector.load %arg5[%c576, %c0_5] : memref<624x128xf32, #tpu.memory_space<vmem>>, vector<8x64xf32>
    %c584 = arith.constant 584 : index
    %c0_6 = arith.constant 0 : index
    %6 = vector.load %arg5[%c584, %c0_6] : memref<624x128xf32, #tpu.memory_space<vmem>>, vector<8x128xf32>
    %c592 = arith.constant 592 : index
    %c0_7 = arith.constant 0 : index
    %7 = vector.load %arg5[%c592, %c0_7] : memref<624x128xf32, #tpu.memory_space<vmem>>, vector<16x128xf32>
    %c608 = arith.constant 608 : index
    %c0_8 = arith.constant 0 : index
    %8 = vector.load %arg5[%c608, %c0_8] : memref<624x128xf32, #tpu.memory_space<vmem>>, vector<16x16xf32>
    %c0_9 = arith.constant 0 : index
    %c0_10 = arith.constant 0 : index
    %9 = vector.load %arg6[%c0_9, %c0_10] : memref<8x128xf32, #tpu.memory_space<vmem>>, vector<1x128xf32>
    %c1 = arith.constant 1 : index
    %c0_11 = arith.constant 0 : index
    %10 = vector.load %arg6[%c1, %c0_11] : memref<8x128xf32, #tpu.memory_space<vmem>>, vector<1x128xf32>
    %c2 = arith.constant 2 : index
    %c0_12 = arith.constant 0 : index
    %11 = vector.load %arg6[%c2, %c0_12] : memref<8x128xf32, #tpu.memory_space<vmem>>, vector<1x128xf32>
    %c3 = arith.constant 3 : index
    %c0_13 = arith.constant 0 : index
    %12 = vector.load %arg6[%c3, %c0_13] : memref<8x128xf32, #tpu.memory_space<vmem>>, vector<1x64xf32>
    %c4 = arith.constant 4 : index
    %c0_14 = arith.constant 0 : index
    %13 = vector.load %arg6[%c4, %c0_14] : memref<8x128xf32, #tpu.memory_space<vmem>>, vector<1x16xf32>
    %c5 = arith.constant 5 : index
    %c0_15 = arith.constant 0 : index
    %14 = vector.load %arg6[%c5, %c0_15] : memref<8x128xf32, #tpu.memory_space<vmem>>, vector<1x1xf32>
    %c0_16 = arith.constant 0 : index
    %c0_17 = arith.constant 0 : index
    %15 = vector.load %arg1[%c0_16, %c0_17] : memref<16x8xi32, #tpu.memory_space<vmem>>, vector<16x8xi32>
    %c0_i32 = arith.constant 0 : i32
    %16 = vector.broadcast %c0_i32 : i32 to vector<16x8xi32>
    %17 = arith.cmpi sgt, %15, %16 : vector<16x8xi32>
    %18 = arith.extui %17 : vector<16x8xi1> to vector<16x8xi32>
    %19 = arith.sitofp %18 : vector<16x8xi32> to vector<16x8xf32>
    %c0_18 = arith.constant 0 : index
    %c0_19 = arith.constant 0 : index
    %20 = vector.load %arg2[%c0_18, %c0_19] : memref<16x8xi32, #tpu.memory_space<vmem>>, vector<16x8xi32>
    %21 = arith.sitofp %20 : vector<16x8xi32> to vector<16x8xf32>
    %cst = arith.constant dense<0.000000e+00> : vector<16x64xf32>
    %22 = tpu.matmul %21, %5, %cst {dimension_numbers = #tpu.dot_dimension_numbers<[1], [0], [0], [1], [0, 0, 1, 1], [], []>} : vector<16x8xf32>, vector<8x64xf32>, vector<16x64xf32> -> vector<16x64xf32>
    %23 = vector.broadcast %12 : vector<1x64xf32> to vector<16x64xf32>
    %24 = arith.cmpf oeq, %22, %23 : vector<16x64xf32>
    %25 = arith.extui %24 : vector<16x64xi1> to vector<16x64xi32>
    %26 = arith.sitofp %25 : vector<16x64xi32> to vector<16x64xf32>
    %cst_20 = arith.constant dense<0.000000e+00> : vector<16x128xf32>
    %27 = tpu.matmul %26, %4, %cst_20 {dimension_numbers = #tpu.dot_dimension_numbers<[1], [0], [0], [1], [0, 0, 1, 1], [], []>} : vector<16x64xf32>, vector<64x128xf32>, vector<16x128xf32> -> vector<16x128xf32>
    %c0_21 = arith.constant 0 : index
    %c0_22 = arith.constant 0 : index
    %28 = vector.load %arg3[%c0_21, %c0_22] : memref<16x128xf32, #tpu.memory_space<vmem>>, vector<16x128xf32>
    %29 = arith.addf %28, %27 : vector<16x128xf32>
    %30 = vector.broadcast %9 : vector<1x128xf32> to vector<16x128xf32>
    %31 = arith.addf %29, %30 : vector<16x128xf32>
    %cst_23 = arith.constant 0.000000e+00 : f32
    %32 = vector.broadcast %cst_23 : f32 to vector<16x128xf32>
    %33 = arith.maximumf %31, %32 : vector<16x128xf32>
    %cst_24 = arith.constant dense<0.000000e+00> : vector<16x128xf32>
    %34 = tpu.matmul %33, %0, %cst_24 {dimension_numbers = #tpu.dot_dimension_numbers<[1], [0], [0], [1], [0, 0, 1, 1], [], []>} : vector<16x128xf32>, vector<128x128xf32>, vector<16x128xf32> -> vector<16x128xf32>
    %35 = vector.broadcast %10 : vector<1x128xf32> to vector<16x128xf32>
    %36 = arith.addf %34, %35 : vector<16x128xf32>
    %cst_25 = arith.constant dense<0.000000e+00> : vector<16x128xf32>
    %37 = tpu.matmul %19, %6, %cst_25 {dimension_numbers = #tpu.dot_dimension_numbers<[1], [0], [0], [1], [0, 0, 1, 1], [], []>} : vector<16x8xf32>, vector<8x128xf32>, vector<16x128xf32> -> vector<16x128xf32>
    %c0_26 = arith.constant 0 : index
    %c0_27 = arith.constant 0 : index
    %38 = vector.load %arg4[%c0_26, %c0_27] : memref<16x16xf32, #tpu.memory_space<vmem>>, vector<16x16xf32>
    %cst_28 = arith.constant dense<0.000000e+00> : vector<16x128xf32>
    %39 = tpu.matmul %38, %7, %cst_28 {dimension_numbers = #tpu.dot_dimension_numbers<[1], [0], [0], [1], [0, 0, 1, 1], [], []>} : vector<16x16xf32>, vector<16x128xf32>, vector<16x128xf32> -> vector<16x128xf32>
    %cst_29 = arith.constant dense<0.000000e+00> : vector<16x128xf32>
    %40 = tpu.matmul %36, %1, %cst_29 {dimension_numbers = #tpu.dot_dimension_numbers<[1], [0], [0], [1], [0, 0, 1, 1], [], []>} : vector<16x128xf32>, vector<128x128xf32>, vector<16x128xf32> -> vector<16x128xf32>
    %41 = arith.mulf %37, %39 : vector<16x128xf32>
    %42 = arith.addf %40, %41 : vector<16x128xf32>
    %43 = vector.broadcast %11 : vector<1x128xf32> to vector<16x128xf32>
    %44 = arith.addf %42, %43 : vector<16x128xf32>
    %cst_30 = arith.constant 0.000000e+00 : f32
    %45 = vector.broadcast %cst_30 : f32 to vector<16x128xf32>
    %46 = arith.maximumf %44, %45 : vector<16x128xf32>
    %cst_31 = arith.constant dense<0.000000e+00> : vector<16x8xf32>
    %47 = tpu.matmul %46, %2, %cst_31 {dimension_numbers = #tpu.dot_dimension_numbers<[1], [0], [0], [1], [0, 0, 1, 1], [], []>} : vector<16x128xf32>, vector<128x8xf32>, vector<16x8xf32> -> vector<16x8xf32>
    %48 = vector.broadcast %14 : vector<1x1xf32> to vector<16x8xf32>
    %49 = arith.addf %47, %48 : vector<16x8xf32>
    %50 = math.exp %49 : vector<16x8xf32>
    %51 = arith.mulf %50, %19 : vector<16x8xf32>
    %cst_32 = arith.constant dense<0.000000e+00> : vector<16xf32>
    %52 = vector.multi_reduction <add>, %51, %cst_32 [1] : vector<16x8xf32> to vector<16xf32>
    %53 = vector.shape_cast %52 : vector<16xf32> to vector<16x1xf32>
    %cst_33 = arith.constant 1.000000e-10 : f32
    %54 = vector.broadcast %cst_33 : f32 to vector<16x1xf32>
    %55 = arith.addf %53, %54 : vector<16x1xf32>
    %56 = vector.broadcast %55 : vector<16x1xf32> to vector<16x8xf32>
    %57 = arith.divf %51, %56 : vector<16x8xf32>
    %cst_34 = arith.constant dense<0.000000e+00> : vector<16x128xf32>
    %58 = tpu.matmul %57, %6, %cst_34 {dimension_numbers = #tpu.dot_dimension_numbers<[1], [0], [0], [1], [0, 0, 1, 1], [], []>} : vector<16x8xf32>, vector<8x128xf32>, vector<16x128xf32> -> vector<16x128xf32>
    %59 = arith.mulf %58, %36 : vector<16x128xf32>
    %cst_35 = arith.constant dense<0.000000e+00> : vector<16x16xf32>
    %60 = tpu.matmul %59, %3, %cst_35 {dimension_numbers = #tpu.dot_dimension_numbers<[1], [0], [0], [1], [0, 0, 1, 1], [], []>} : vector<16x128xf32>, vector<128x16xf32>, vector<16x16xf32> -> vector<16x16xf32>
    %cst_36 = arith.constant dense<0.000000e+00> : vector<16x16xf32>
    %61 = tpu.matmul %60, %8, %cst_36 {dimension_numbers = #tpu.dot_dimension_numbers<[1], [0], [0], [1], [0, 0, 1, 1], [], []>} : vector<16x16xf32>, vector<16x16xf32>, vector<16x16xf32> -> vector<16x16xf32>
    %62 = vector.broadcast %13 : vector<1x16xf32> to vector<16x16xf32>
    %63 = arith.addf %61, %62 : vector<16x16xf32>
    %cst_37 = arith.constant 0.000000e+00 : f32
    %64 = vector.broadcast %cst_37 : f32 to vector<16x16xf32>
    %65 = arith.maximumf %63, %64 : vector<16x16xf32>
    %c0_38 = arith.constant 0 : index
    %c0_39 = arith.constant 0 : index
    %66 = vector.load %arg7[%c0_38, %c0_39] : memref<16x16xf32, #tpu.memory_space<vmem>>, vector<16x16xf32>
    tpu.vector_store %arg7[%c0_38, %c0_39], %65 {strides = array<i32>} : memref<16x16xf32, #tpu.memory_space<vmem>>, vector<16x16xf32>,
    return
  }
  func.func @transform_0(%arg0: i32) -> (i32, i32) {
    %c0_i32 = arith.constant 0 : i32
    %c0_i32_0 = arith.constant 0 : i32
    return %arg0, %c0_i32 : i32, i32
  }
  func.func @transform_1(%arg0: i32) -> (i32, i32) {
    %c0_i32 = arith.constant 0 : i32
    %c0_i32_0 = arith.constant 0 : i32
    return %arg0, %c0_i32 : i32, i32
  }
  func.func @transform_2(%arg0: i32) -> (i32, i32) {
    %c0_i32 = arith.constant 0 : i32
    %c0_i32_0 = arith.constant 0 : i32
    return %arg0, %c0_i32 : i32, i32
  }
  func.func @transform_3(%arg0: i32) -> (i32, i32) {
    %c0_i32 = arith.constant 0 : i32
    %c0_i32_0 = arith.constant 0 : i32
    return %arg0, %c0_i32 : i32, i32
  }
  func.func @transform_4(%arg0: i32) -> (i32, i32) {
    %c0_i32 = arith.constant 0 : i32
    %c0_i32_0 = arith.constant 0 : i32
    %c0_i32_1 = arith.constant 0 : i32
    return %c0_i32, %c0_i32_0 : i32, i32
  }
  func.func @transform_5(%arg0: i32) -> (i32, i32) {
    %c0_i32 = arith.constant 0 : i32
    %c0_i32_0 = arith.constant 0 : i32
    %c0_i32_1 = arith.constant 0 : i32
    return %c0_i32, %c0_i32_0 : i32, i32
  }
  func.func @transform_6(%arg0: i32) -> (i32, i32) {
    %c0_i32 = arith.constant 0 : i32
    %c0_i32_0 = arith.constant 0 : i32
    return %arg0, %c0_i32 : i32, i32
  }
}

</mosaic_0001>

<llo_original>
// kernel: tpu_custom_call.1
$region0: #{tpu_custom_call.1}
  #allocation0 [shape = 'u32[]', space=smem, size = 0x4, offset = 0x4, fixed_abs, tag = 'smem constant byte address 0x4 - core index']
  #allocation1 [shape = 'u32[144,128]{1,0:T(1,128)}', space=vmem, size = 0x12000, scoped, tag = 'internal scratch']
  %s0 = inlined_call_operand.vmem [shape: s32[32,8], index: 0, kind: input, shape index: {}]
  %s1 = inlined_call_operand.vmem [shape: s32[32,8], index: 1, kind: input, shape index: {}]
  %s2 = inlined_call_operand.vmem [shape: f32[32,128], index: 2, kind: input, shape index: {}]
  %s3 = inlined_call_operand.vmem [shape: f32[32,16], index: 3, kind: input, shape index: {}]
  %s4 = inlined_call_operand.hbm [shape: f32[624,128], index: 4, kind: input, shape index: {}]
  %s5 = inlined_call_operand.vmem [shape: f32[8,128], index: 5, kind: input, shape index: {}]
  %s6 = inlined_call_operand.vmem [shape: f32[32,16], index: 6, kind: output, shape index: {}]
  %s7 = sld [smem:[#allocation0]]
  $region61: #{tpu_custom_call.1} parent=0
    _
  %s9 = ssub.s32 1, %s7
  %s10 = scalar_select 0, %s9, %s7
  $region1: #{tpu_custom_call.1} parent=0
    #allocation2 [shape = 'u8[319488]{0}', space=vmem, size = 0x4e000, scoped, tag = 'input window, operand 4, single buffered']
    #allocation3 [shape = 's32[2]{0}', space=sflag, size = 0x8, scoped, tag = 'scoped memory for tpu_custom_call.1']
    %11 = vsyncpa [#allocation3], 0
    loop: start=0, step=1, limit=4
    $region2: #{tpu_custom_call.1} parent=1 // loop_pre_header
      _
    $region3: #{tpu_custom_call.1} parent=1 // loop_header
      %s13 = sphi 0, %s17
      %p14 = scmp.ge.s32.totalorder %s13, 4
      %s23 = sphi 0, %s25
      %s26 = sphi 0, %s23
      %s27 = sphi 0, %s26
      %s43 = sphi 0, %s27
      %s49 = sphi 0, %s51
      %s52 = sphi 0, %s49
      %s53 = sphi 0, %s52
      %s69 = sphi 0, %s53
      %s75 = sphi 0, %s77
      %s78 = sphi 0, %s75
      %s79 = sphi 0, %s78
      %s95 = sphi 0, %s79
      %s101 = sphi 0, %s103
      %s104 = sphi 0, %s101
      %s105 = sphi 0, %s104
      %s121 = sphi 0, %s105
      %s125 = sphi 0, %s125
      %s127 = sphi 0, %s125
      %s128 = sphi 0, %s127
      %s142 = sphi 0, %s128
      %s146 = sphi 0, %s146
      %s148 = sphi 0, %s146
      %s149 = sphi 0, %s148
      %s163 = sphi 0, %s149
      %s169 = sphi 0, %s171
      %s172 = sphi 0, %s169
      %s173 = sphi 0, %s172
      %s189 = sphi 0, %s173
    $region4: #{tpu_custom_call.1} parent=1 // loop_header_branch
      %16 = sbr.rel (%p14) target = $region8
    $region5: #{tpu_custom_call.1} parent=1 // loop_body
      %s18 = ssub.s32 %s13, 1
      %s19 = ssub.s32 %s13, 2
      %s20 = sadd.s32 %s13, 1
      %s21 = ssub.s32 %s13, %s20
      %p22 = scmp.eq.s32.totalorder %s21, 0
      %s24 = sadd.s32 %s23, 1
      %s25 = scalar_select %p22, %s23, %s24
      %p28 = pneg %p22
      %p29 = scmp.eq.s32.totalorder %s13, 1
      %p30 = por %p28, %p29
      %p31 = scmp.ne.s32.totalorder %s23, %s26
      %p32 = scmp.eq.s32.totalorder %s13, 0
      %p33 = por %p31, %p32
      %p34 = scmp.ne.s32.totalorder %s23, %s26
      %p35 = scmp.eq.s32.totalorder %s18, 1
      %p36 = por %p34, %p35
      %p37 = scmp.ne.s32.totalorder %s26, %s27
      %p38 = scmp.eq.s32.totalorder %s18, 0
      %p39 = por %p37, %p38
      %p40 = scmp.ne.s32.totalorder %s26, %s27
      %p41 = scmp.eq.s32.totalorder %s19, 1
      %p42 = por %p40, %p41
      %p44 = scmp.ne.s32.totalorder %s27, %s43
      %p45 = scmp.eq.s32.totalorder %s19, 0
      %p46 = por %p44, %p45
      %s47 = ssub.s32 %s13, %s20
      %p48 = scmp.eq.s32.totalorder %s47, 0
      %s50 = sadd.s32 %s49, 1
      %s51 = scalar_select %p48, %s49, %s50
      %p54 = pneg %p48
      %p55 = scmp.eq.s32.totalorder %s13, 1
      %p56 = por %p54, %p55
      %p57 = scmp.ne.s32.totalorder %s49, %s52
      %p58 = scmp.eq.s32.totalorder %s13, 0
      %p59 = por %p57, %p58
      %p60 = scmp.ne.s32.totalorder %s49, %s52
      %p61 = scmp.eq.s32.totalorder %s18, 1
      %p62 = por %p60, %p61
      %p63 = scmp.ne.s32.totalorder %s52, %s53
      %p64 = scmp.eq.s32.totalorder %s18, 0
      %p65 = por %p63, %p64
      %p66 = scmp.ne.s32.totalorder %s52, %s53
      %p67 = scmp.eq.s32.totalorder %s19, 1
      %p68 = por %p66, %p67
      %p70 = scmp.ne.s32.totalorder %s53, %s69
      %p71 = scmp.eq.s32.totalorder %s19, 0
      %p72 = por %p70, %p71
      %s73 = ssub.s32 %s13, %s20
      %p74 = scmp.eq.s32.totalorder %s73, 0
      %s76 = sadd.s32 %s75, 1
      %s77 = scalar_select %p74, %s75, %s76
      %p80 = pneg %p74
      %p81 = scmp.eq.s32.totalorder %s13, 1
      %p82 = por %p80, %p81
      %p83 = scmp.ne.s32.totalorder %s75, %s78
      %p84 = scmp.eq.s32.totalorder %s13, 0
      %p85 = por %p83, %p84
      %p86 = scmp.ne.s32.totalorder %s75, %s78
      %p87 = scmp.eq.s32.totalorder %s18, 1
      %p88 = por %p86, %p87
      %p89 = scmp.ne.s32.totalorder %s78, %s79
      %p90 = scmp.eq.s32.totalorder %s18, 0
      %p91 = por %p89, %p90
      %p92 = scmp.ne.s32.totalorder %s78, %s79
      %p93 = scmp.eq.s32.totalorder %s19, 1
      %p94 = por %p92, %p93
      %p96 = scmp.ne.s32.totalorder %s79, %s95
      %p97 = scmp.eq.s32.totalorder %s19, 0
      %p98 = por %p96, %p97
      %s99 = ssub.s32 %s13, %s20
      %p100 = scmp.eq.s32.totalorder %s99, 0
      %s102 = sadd.s32 %s101, 1
      %s103 = scalar_select %p100, %s101, %s102
      %p106 = pneg %p100
      %p107 = scmp.eq.s32.totalorder %s13, 1
      %p108 = por %p106, %p107
      %p109 = scmp.ne.s32.totalorder %s101, %s104
      %p110 = scmp.eq.s32.totalorder %s13, 0
      %p111 = por %p109, %p110
      %p112 = scmp.ne.s32.totalorder %s101, %s104
      %p113 = scmp.eq.s32.totalorder %s18, 1
      %p114 = por %p112, %p113
      %p115 = scmp.ne.s32.totalorder %s104, %s105
      %p116 = scmp.eq.s32.totalorder %s18, 0
      %p117 = por %p115, %p116
      %p118 = scmp.ne.s32.totalorder %s104, %s105
      %p119 = scmp.eq.s32.totalorder %s19, 1
      %p120 = por %p118, %p119
      %p122 = scmp.ne.s32.totalorder %s105, %s121
      %p123 = scmp.eq.s32.totalorder %s19, 0
      %p124 = por %p122, %p123
      %s126 = sadd.s32 %s125, 1
      %p129 = scmp.eq.s32.totalorder %s13, 1
      %p130 = scmp.ne.s32.totalorder %s125, %s127
      %p131 = scmp.eq.s32.totalorder %s13, 0
      %p132 = por %p130, %p131
      %p133 = scmp.ne.s32.totalorder %s125, %s127
      %p134 = scmp.eq.s32.totalorder %s18, 1
      %p135 = por %p133, %p134
      %p136 = scmp.ne.s32.totalorder %s127, %s128
      %p137 = scmp.eq.s32.totalorder %s18, 0
      %p138 = por %p136, %p137
      %p139 = scmp.ne.s32.totalorder %s127, %s128
      %p140 = scmp.eq.s32.totalorder %s19, 1
      %p141 = por %p139, %p140
      %p143 = scmp.ne.s32.totalorder %s128, %s142
      %p144 = scmp.eq.s32.totalorder %s19, 0
      %p145 = por %p143, %p144
      %s147 = sadd.s32 %s146, 1
      %p150 = scmp.eq.s32.totalorder %s13, 1
      %p151 = scmp.ne.s32.totalorder %s146, %s148
      %p152 = scmp.eq.s32.totalorder %s13, 0
      %p153 = por %p151, %p152
      %p154 = scmp.ne.s32.totalorder %s146, %s148
      %p155 = scmp.eq.s32.totalorder %s18, 1
      %p156 = por %p154, %p155
      %p157 = scmp.ne.s32.totalorder %s148, %s149
      %p158 = scmp.eq.s32.totalorder %s18, 0
      %p159 = por %p157, %p158
      %p160 = scmp.ne.s32.totalorder %s148, %s149
      %p161 = scmp.eq.s32.totalorder %s19, 1
      %p162 = por %p160, %p161
      %p164 = scmp.ne.s32.totalorder %s149, %s163
      %p165 = scmp.eq.s32.totalorder %s19, 0
      %p166 = por %p164, %p165
      %s167 = ssub.s32 %s13, %s20
      %p168 = scmp.eq.s32.totalorder %s167, 0
      %s170 = sadd.s32 %s169, 1
      %s171 = scalar_select %p168, %s169, %s170
      %p174 = pneg %p168
      %p175 = scmp.eq.s32.totalorder %s13, 1
      %p176 = por %p174, %p175
      %p177 = scmp.ne.s32.totalorder %s169, %s172
      %p178 = scmp.eq.s32.totalorder %s13, 0
      %p179 = por %p177, %p178
      %p180 = scmp.ne.s32.totalorder %s169, %s172
      %p181 = scmp.eq.s32.totalorder %s18, 1
      %p182 = por %p180, %p181
      %p183 = scmp.ne.s32.totalorder %s172, %s173
      %p184 = scmp.eq.s32.totalorder %s18, 0
      %p185 = por %p183, %p184
      %p186 = scmp.ne.s32.totalorder %s172, %s173
      %p187 = scmp.eq.s32.totalorder %s19, 1
      %p188 = por %p186, %p187
      %p190 = scmp.ne.s32.totalorder %s173, %s189
      %p191 = scmp.eq.s32.totalorder %s19, 0
      %p192 = por %p190, %p191
      %p193 = scmp.le.s32.totalorder 1, %s13
      %p194 = scmp.lt.s32.totalorder %s13, 3
      %p195 = pnand %p193, %p194
      %p196 = pneg %p195
      // Predicated region
      $region9: #{tpu_custom_call.1} parent=5 // pred_check
        _
      $region10: #{tpu_custom_call.1} parent=5 // pred_check_branch
        %198 = sbr.rel (%p195) target = $region12
      $region11: #{tpu_custom_call.1} parent=5 // pred_region
        %s199 = ssub.s32 %s13, 1
        // Predicated region
        $region13: #{tpu_custom_call.1} parent=11 // pred_check
          %p200 = pneg %p138
        $region14: #{tpu_custom_call.1} parent=11 // pred_check_branch
          %202 = sbr.rel (%p200) target = $region16
        $region15: #{tpu_custom_call.1} parent=11 // pred_region
          %s204 = ssub.s32 9984, 9984
          %205 = vsyncadd [#allocation3], %s204
          %s206 = sshll.u32 [#allocation2], 4
          %s207 = int_to_ptr.vmem [resolvable:$true] %s206
          %212 = dma.hbm_to_vmem [thread:$0]  %s4, 9984, %s207, [#allocation3], 128, 128, 8
        $region16: #{tpu_custom_call.1} parent=11 // pred_fallthru
          _
        // Predicated region
        $region17: #{tpu_custom_call.1} parent=11 // pred_check
          %p213 = pneg %p159
        $region18: #{tpu_custom_call.1} parent=11 // pred_check_branch
          %215 = sbr.rel (%p213) target = $region20
        $region19: #{tpu_custom_call.1} parent=11 // pred_region
          _
        $region20: #{tpu_custom_call.1} parent=11 // pred_fallthru
          _
      $region12: #{tpu_custom_call.1} parent=5 // pred_fallthru
        _
      %p216 = scmp.lt.s32.totalorder %s13, 2
      // Predicated region
      $region21: #{tpu_custom_call.1} parent=5 // pred_check
        %p217 = pneg %p216
      $region22: #{tpu_custom_call.1} parent=5 // pred_check_branch
        %219 = sbr.rel (%p217) target = $region24
      $region23: #{tpu_custom_call.1} parent=5 // pred_region
        // Predicated region
        $region25: #{tpu_custom_call.1} parent=23 // pred_check
          %p220 = pneg %p33
        $region26: #{tpu_custom_call.1} parent=23 // pred_check_branch
          %222 = sbr.rel (%p220) target = $region28
        $region27: #{tpu_custom_call.1} parent=23 // pred_region
          %s223 = smul.u32 2, %s13
          %p224 = scmp.lt.s32.totalorder %s223, 3
          %s225 = scalar_select %p224, %s223, 3
          %s226 = smul.addr %s225, 8
          %s227 = scalar_lea.vmem %s0, %s226
          %s228 = smul.u32 2, %s13
        $region28: #{tpu_custom_call.1} parent=23 // pred_fallthru
          _
        // Predicated region
        $region29: #{tpu_custom_call.1} parent=23 // pred_check
          %p229 = pneg %p59
        $region30: #{tpu_custom_call.1} parent=23 // pred_check_branch
          %231 = sbr.rel (%p229) target = $region32
        $region31: #{tpu_custom_call.1} parent=23 // pred_region
          %s232 = smul.u32 2, %s13
          %p233 = scmp.lt.s32.totalorder %s232, 3
          %s234 = scalar_select %p233, %s232, 3
          %s235 = smul.addr %s234, 8
          %s236 = scalar_lea.vmem %s1, %s235
          %s237 = smul.u32 2, %s13
        $region32: #{tpu_custom_call.1} parent=23 // pred_fallthru
          _
        // Predicated region
        $region33: #{tpu_custom_call.1} parent=23 // pred_check
          %p238 = pneg %p85
        $region34: #{tpu_custom_call.1} parent=23 // pred_check_branch
          %240 = sbr.rel (%p238) target = $region36
        $region35: #{tpu_custom_call.1} parent=23 // pred_region
          %s241 = smul.u32 2, %s13
          %p242 = scmp.lt.s32.totalorder %s241, 3
          %s243 = scalar_select %p242, %s241, 3
          %s244 = smul.addr %s243, 8
          %s245 = scalar_lea.vmem %s2, %s244
          %s246 = smul.u32 2, %s13
        $region36: #{tpu_custom_call.1} parent=23 // pred_fallthru
          _
        // Predicated region
        $region37: #{tpu_custom_call.1} parent=23 // pred_check
          %p247 = pneg %p111
        $region38: #{tpu_custom_call.1} parent=23 // pred_check_branch
          %249 = sbr.rel (%p247) target = $region40
        $region39: #{tpu_custom_call.1} parent=23 // pred_region
          %s250 = smul.u32 2, %s13
          %p251 = scmp.lt.s32.totalorder %s250, 3
          %s252 = scalar_select %p251, %s250, 3
          %s253 = smul.addr %s252, 8
          %s254 = scalar_lea.vmem %s3, %s253
          %s255 = smul.u32 2, %s13
        $region40: #{tpu_custom_call.1} parent=23 // pred_fallthru
          _
      $region24: #{tpu_custom_call.1} parent=5 // pred_fallthru
        _
      %p256 = scmp.le.s32.totalorder 1, %s13
      %p257 = scmp.lt.s32.totalorder %s13, 3
      %p258 = pnand %p256, %p257
      %p259 = pneg %p258
      // Predicated region
      $region41: #{tpu_custom_call.1} parent=5 // pred_check
        _
      $region42: #{tpu_custom_call.1} parent=5 // pred_check_branch
        %261 = sbr.rel (%p258) target = $region44
      $region43: #{tpu_custom_call.1} parent=5 // pred_region
        %s262 = ssub.s32 %s13, 1
        // Predicated region
        $region45: #{tpu_custom_call.1} parent=43 // pred_check
          %p263 = pneg %p138
        $region46: #{tpu_custom_call.1} parent=43 // pred_check_branch
          %265 = sbr.rel (%p263) target = $region48
        $region47: #{tpu_custom_call.1} parent=43 // pred_region
          %266 = dma.done [#allocation3], 9984
        $region48: #{tpu_custom_call.1} parent=43 // pred_fallthru
          _
        %s267 = smul.u32 2, %s18
        %p268 = scmp.lt.s32.totalorder %s267, 3
        %s269 = scalar_select %p268, %s267, 3
        %s270 = smul.addr %s269, 8
        %s271 = scalar_lea.vmem %s0, %s270
        %p272 = pneg %p39
        %p273 = pneg %p36
        %s274 = smul.u32 2, %s18
        %p275 = scmp.lt.s32.totalorder %s274, 3
        %s276 = scalar_select %p275, %s274, 3
        %s277 = smul.addr %s276, 8
        %s278 = scalar_lea.vmem %s1, %s277
        %p279 = pneg %p65
        %p280 = pneg %p62
        %s281 = smul.u32 2, %s18
        %p282 = scmp.lt.s32.totalorder %s281, 3
        %s283 = scalar_select %p282, %s281, 3
        %s284 = smul.addr %s283, 8
        %s285 = scalar_lea.vmem %s2, %s284
        %p286 = pneg %p91
        %p287 = pneg %p88
        %s288 = smul.u32 2, %s18
        %p289 = scmp.lt.s32.totalorder %s288, 3
        %s290 = scalar_select %p289, %s288, 3
        %s291 = smul.addr %s290, 8
        %s292 = scalar_lea.vmem %s3, %s291
        %p293 = pneg %p117
        %p294 = pneg %p114
        %p295 = pneg %p138
        %p296 = pneg %p135
        %p297 = pneg %p159
        %p298 = pneg %p156
        %p299 = pneg %p185
        %p300 = pneg %p182
        %s301 = smul.u32 2, %s18
        %p302 = scmp.lt.s32.totalorder %s301, 3
        %s303 = scalar_select %p302, %s301, 3
        %s304 = smul.addr %s303, 8
        %s305 = scalar_lea.vmem %s6, %s304
        %s306 = smul.u32 2, %s18
        %p307 = scmp.lt.s32.totalorder %s306, 3
        %s308 = scalar_select %p307, %s306, 3
        %s309 = smul.addr %s308, 8
        %s310 = scalar_lea.vmem %s0, %s309
        %s311 = smul.u32 2, %s18
        %s312 = smul.u32 2, %s18
        %p313 = scmp.lt.s32.totalorder %s312, 3
        %s314 = scalar_select %p313, %s312, 3
        %s315 = smul.addr %s314, 8
        %s316 = scalar_lea.vmem %s1, %s315
        %s317 = smul.u32 2, %s18
        %s318 = smul.u32 2, %s18
        %p319 = scmp.lt.s32.totalorder %s318, 3
        %s320 = scalar_select %p319, %s318, 3
        %s321 = smul.addr %s320, 8
        %s322 = scalar_lea.vmem %s2, %s321
        %s323 = smul.u32 2, %s18
        %s324 = smul.u32 2, %s18
        %p325 = scmp.lt.s32.totalorder %s324, 3
        %s326 = scalar_select %p325, %s324, 3
        %s327 = smul.addr %s326, 8
        %s328 = scalar_lea.vmem %s3, %s327
        %s329 = smul.u32 2, %s18
        %s330 = smul.u32 2, %s18
        %p331 = scmp.lt.s32.totalorder %s330, 3
        %s332 = scalar_select %p331, %s330, 3
        %s333 = smul.addr %s332, 8
        %s334 = scalar_lea.vmem %s6, %s333
        %s335 = smul.u32 2, %s18
        %v336 = vld [vmem:[#allocation2] sm:$0xff]
        %v337 = vld [vmem:[#allocation2 + $0x8] sm:$0xff]
        %v338 = vld [vmem:[#allocation2 + $0x10] sm:$0xff]
        %v339 = vld [vmem:[#allocation2 + $0x18] sm:$0xff]
        %v340 = vld [vmem:[#allocation2 + $0x20] sm:$0xff]
        %v341 = vld [vmem:[#allocation2 + $0x28] sm:$0xff]
        %v342 = vld [vmem:[#allocation2 + $0x30] sm:$0xff]
        %v343 = vld [vmem:[#allocation2 + $0x38] sm:$0xff]
        %v344 = vld [vmem:[#allocation2 + $0x40] sm:$0xff]
        %v345 = vld [vmem:[#allocation2 + $0x48] sm:$0xff]
        %v346 = vld [vmem:[#allocation2 + $0x50] sm:$0xff]
        %v347 = vld [vmem:[#allocation2 + $0x58] sm:$0xff]
        %v348 = vld [vmem:[#allocation2 + $0x60] sm:$0xff]
        %v349 = vld [vmem:[#allocation2 + $0x68] sm:$0xff]
        %v350 = vld [vmem:[#allocation2 + $0x70] sm:$0xff]
        %v351 = vld [vmem:[#allocation2 + $0x78] sm:$0xff]
        %v352 = vld [vmem:[#allocation2 + $0x80] sm:$0xff]
        %v353 = vld [vmem:[#allocation2 + $0x88] sm:$0xff]
        %v354 = vld [vmem:[#allocation2 + $0x90] sm:$0xff]
        %v355 = vld [vmem:[#allocation2 + $0x98] sm:$0xff]
        %v356 = vld [vmem:[#allocation2 + $0xa0] sm:$0xff]
        %v357 = vld [vmem:[#allocation2 + $0xa8] sm:$0xff]
        %v358 = vld [vmem:[#allocation2 + $0xb0] sm:$0xff]
        %v359 = vld [vmem:[#allocation2 + $0xb8] sm:$0xff]
        %v360 = vld [vmem:[#allocation2 + $0xc0] sm:$0xff]
        %v361 = vld [vmem:[#allocation2 + $0xc8] sm:$0xff]
        %v362 = vld [vmem:[#allocation2 + $0xd0] sm:$0xff]
        %v363 = vld [vmem:[#allocation2 + $0xd8] sm:$0xff]
        %v364 = vld [vmem:[#allocation2 + $0xe0] sm:$0xff]
        %v365 = vld [vmem:[#allocation2 + $0xe8] sm:$0xff]
        %v366 = vld [vmem:[#allocation2 + $0xf0] sm:$0xff]
        %v367 = vld [vmem:[#allocation2 + $0xf8] sm:$0xff]
        %v368 = vld [vmem:[#allocation2 + $0x100] sm:$0xff]
        %v369 = vld [vmem:[#allocation2 + $0x108] sm:$0xff]
        %v370 = vld [vmem:[#allocation2 + $0x110] sm:$0xff]
        %v371 = vld [vmem:[#allocation2 + $0x118] sm:$0xff]
        %v372 = vld [vmem:[#allocation2 + $0x120] sm:$0xff]
        %v373 = vld [vmem:[#allocation2 + $0x128] sm:$0xff]
        %v374 = vld [vmem:[#allocation2 + $0x130] sm:$0xff]
        %v375 = vld [vmem:[#allocation2 + $0x138] sm:$0xff]
        %v376 = vld [vmem:[#allocation2 + $0x140] sm:$0xff]
        %v377 = vld [vmem:[#allocation2 + $0x148] sm:$0xff]
        %v378 = vld [vmem:[#allocation2 + $0x150] sm:$0xff]
        %v379 = vld [vmem:[#allocation2 + $0x158] sm:$0xff]
        %v380 = vld [vmem:[#allocation2 + $0x160] sm:$0xff]
        %v381 = vld [vmem:[#allocation2 + $0x168] sm:$0xff]
        %v382 = vld [vmem:[#allocation2 + $0x170] sm:$0xff]
        %v383 = vld [vmem:[#allocation2 + $0x178] sm:$0xff]
        %v384 = vld [vmem:[#allocation2 + $0x180] sm:$0xff]
        %v385 = vld [vmem:[#allocation2 + $0x188] sm:$0xff]
        %v386 = vld [vmem:[#allocation2 + $0x190] sm:$0xff]
        %v387 = vld [vmem:[#allocation2 + $0x198] sm:$0xff]
        %v388 = vld [vmem:[#allocation2 + $0x1a0] sm:$0xff]
        %v389 = vld [vmem:[#allocation2 + $0x1a8] sm:$0xff]
        %v390 = vld [vmem:[#allocation2 + $0x1b0] sm:$0xff]
        %v391 = vld [vmem:[#allocation2 + $0x1b8] sm:$0xff]
        %v392 = vld [vmem:[#allocation2 + $0x1c0] sm:$0xff]
        %v393 = vld [vmem:[#allocation2 + $0x1c8] sm:$0xff]
        %v394 = vld [vmem:[#allocation2 + $0x1d0] sm:$0xff]
        %v395 = vld [vmem:[#allocation2 + $0x1d8] sm:$0xff]
        %v396 = vld [vmem:[#allocation2 + $0x1e0] sm:$0xff]
        %v397 = vld [vmem:[#allocation2 + $0x1e8] sm:$0xff]
        %v398 = vld [vmem:[#allocation2 + $0x1f0] sm:$0xff]
        %v399 = vld [vmem:[#allocation2 + $0x1f8] sm:$0xff]
        %v400 = vld [vmem:[#allocation2 + $0x200] sm:$0xff]
        %v401 = vld [vmem:[#allocation2 + $0x208] sm:$0xff]
        %v402 = vld [vmem:[#allocation2 + $0x210] sm:$0xff]
        %v403 = vld [vmem:[#allocation2 + $0x218] sm:$0xff]
        %v404 = vld [vmem:[#allocation2 + $0x220] sm:$0xff]
        %v405 = vld [vmem:[#allocation2 + $0x228] sm:$0xff]
        %v406 = vld [vmem:[#allocation2 + $0x230] sm:$0xff]
        %v407 = vld [vmem:[#allocation2 + $0x238] sm:$0xff]
        %v408 = vld [vmem:[#allocation2 + $0x240] sm:$0xff]
        %v409 = vld [vmem:[#allocation2 + $0x248] sm:$0xff]
        %v410 = vld [vmem:[#allocation2 + $0x250] sm:$0xff]
        %v411 = vld [vmem:[#allocation2 + $0x258] sm:$0xff]
        %v412 = vld [vmem:[#allocation2 + $0x260] sm:$0xff]
        %v413 = vld [vmem:[#allocation2 + $0x268] sm:$0xff]
        %v414 = vld [vmem:[%s5] sm:$0x1]
        %v415 = vld [vmem:[%s5 + $0x1] sm:$0x1]
        %v416 = vld [vmem:[%s5 + $0x2] sm:$0x1]
        %v417 = vld [vmem:[%s5 + $0x3] sm:$0x1]
        %v418 = vld [vmem:[%s5 + $0x4] sm:$0x1]
        %v419 = vld [vmem:[%s5 + $0x5] sm:$0x1]
        %v420 = vld [vmem:[%s310] sm:$0xff]
        %v421 = vld [vmem:[%s310 + $0x8] sm:$0xff]
        %vm422 = vcmp.gt.s32.totalorder %v420, 0
        %vm423 = vcmp.gt.s32.totalorder %v421, 0
        %v424 = vsel %vm422, 1, 0
        %v425 = vsel %vm423, 1, 0
        %v426 = vcvt.s32.f32 %v424
        %v427 = vcvt.s32.f32 %v425
        %v428 = vld [vmem:[%s316] sm:$0xff]
        %v429 = vld [vmem:[%s316 + $0x8] sm:$0xff]
        %v430 = vcvt.s32.f32 %v428
        %v431 = vcvt.s32.f32 %v429
        %vm432 = vcmask 64512
        %v434 = vsel %vm432, %v430, 0
        %v437 = vsel %vm432, %v431, 0
        %439 = vmatprep.subr.mxu0 0.0
        %440 = vmatpush1.msra.mxu0 0.0
        %441 = vmatprep.subr.mxu0 0.0
        %442 = vmatpush1.msra.mxu0 0.0
        %443 = vmatprep.subr.mxu0 0.0
        %444 = vmatpush1.msra.mxu0 0.0
        %445 = vmatprep.subr.mxu0 0.0
        %446 = vmatpush1.msra.mxu0 0.0
        %447 = vmatprep.subr.mxu0 0.0
        %448 = vmatpush1.msra.mxu0 0.0
        %449 = vmatprep.subr.mxu0 0.0
        %450 = vmatpush1.msra.mxu0 0.0
        %451 = vmatprep.subr.mxu0 0.0
        %452 = vmatpush1.msra.mxu0 0.0
        %453 = vmatprep.subr.mxu0 0.0
        %454 = vmatpush1.msra.mxu0 0.0
        %455 = vmatprep.subr.mxu0 0.0
        %456 = vmatpush1.msra.mxu0 0.0
        %457 = vmatprep.subr.mxu0 0.0
        %458 = vmatpush1.msra.mxu0 0.0
        %459 = vmatprep.subr.mxu0 0.0
        %460 = vmatpush1.msra.mxu0 0.0
        %461 = vmatprep.subr.mxu0 0.0
        %462 = vmatpush1.msra.mxu0 0.0
        %463 = vmatprep.subr.mxu0 0.0
        %464 = vmatpush1.msra.mxu0 0.0
        %465 = vmatprep.subr.mxu0 0.0
        %466 = vmatpush1.msra.mxu0 0.0
        %467 = vmatprep.subr.mxu0 0.0
        %468 = vmatpush1.msra.mxu0 0.0
        %469 = vmatprep.subr.mxu0 0.0
        %470 = vmatpush1.msra.mxu0 %v408
        %471 = vmatprep.subr.mxu0 0.0
        %472 = vmatpush2.msra.mxu0 0.0
        %473 = vmatprep.subr.mxu0 0.0
        %474 = vmatpush2.msra.mxu0 0.0
        %475 = vmatprep.subr.mxu0 0.0
        %476 = vmatpush2.msra.mxu0 0.0
        %477 = vmatprep.subr.mxu0 0.0
        %478 = vmatpush2.msra.mxu0 0.0
        %479 = vmatprep.subr.mxu0 0.0
        %480 = vmatpush2.msra.mxu0 0.0
        %481 = vmatprep.subr.mxu0 0.0
        %482 = vmatpush2.msra.mxu0 0.0
        %483 = vmatprep.subr.mxu0 0.0
        %484 = vmatpush2.msra.mxu0 0.0
        %485 = vmatprep.subr.mxu0 0.0
        %486 = vmatpush2.msra.mxu0 0.0
        %487 = vmatprep.subr.mxu0 0.0
        %488 = vmatpush2.msra.mxu0 0.0
        %489 = vmatprep.subr.mxu0 0.0
        %490 = vmatpush2.msra.mxu0 0.0
        %491 = vmatprep.subr.mxu0 0.0
        %492 = vmatpush2.msra.mxu0 0.0
        %493 = vmatprep.subr.mxu0 0.0
        %494 = vmatpush2.msra.mxu0 0.0
        %495 = vmatprep.subr.mxu0 0.0
        %496 = vmatpush2.msra.mxu0 0.0
        %497 = vmatprep.subr.mxu0 0.0
        %498 = vmatpush2.msra.mxu0 0.0
        %499 = vmatprep.subr.mxu0 0.0
        %500 = vmatpush2.msra.mxu0 0.0
        %501 = vmatprep.subr.mxu0 0.0
        %502 = vmatpush2.msra.mxu0 0.0
        %503 = vmatprep.mubr.f32.mxu0 0.0
        %504 = vmatmul.mubr.f32.gmra.mxu0 %v434
        %v505 = vpop.f32.mrf.mxu0
        %v506 = vadd.f32 0.0, %v505
        %v507 = vpop.f32.mrf.mxu0
        %508 = vmatprep.mubr.f32.mxu0 0.0
        %509 = vmatmul.mubr.f32.gmra.mxu0 %v437
        %v510 = vpop.f32.mrf.mxu0
        %v511 = vadd.f32 0.0, %v510
        %v512 = vpop.f32.mrf.mxu0
        %513 = vdwg.mxu0
        %v514 = vlaneseq
        %v515 = vshrl.u32 %v514, 7
        %v516 = vsub.s32 0, %v515
        %v517 = vrot.slane %v417, %v516
        %vm518 = vcmp.eq.f32.partialorder %v506, %v517
        %vm519 = vcmp.eq.f32.partialorder %v511, %v517
        %v520 = vsel %vm518, 1, 0
        %v521 = vsel %vm519, 1, 0
        %v522 = vcvt.s32.f32 %v520
        %v523 = vcvt.s32.f32 %v521
        %vm524 = vcmask 523264
        %v526 = vsel %vm524, %v522, 0
        %v529 = vsel %vm524, %v523, 0
        %531 = vmatprep.subr.mxu0 0.0
        %532 = vmatpush1.msra.mxu0 0.0
        %533 = vmatprep.subr.mxu0 0.0
        %534 = vmatpush1.msra.mxu0 0.0
        %535 = vmatprep.subr.mxu0 0.0
        %536 = vmatpush1.msra.mxu0 0.0
        %537 = vmatprep.subr.mxu0 0.0
        %538 = vmatpush1.msra.mxu0 0.0
        %539 = vmatprep.subr.mxu0 0.0
        %540 = vmatpush1.msra.mxu0 0.0
        %541 = vmatprep.subr.mxu0 0.0
        %542 = vmatpush1.msra.mxu0 0.0
        %543 = vmatprep.subr.mxu0 0.0
        %544 = vmatpush1.msra.mxu0 0.0
        %545 = vmatprep.subr.mxu0 0.0
        %546 = vmatpush1.msra.mxu0 0.0
        %547 = vmatprep.subr.mxu0 0.0
        %548 = vmatpush1.msra.mxu0 %v407
        %549 = vmatprep.subr.mxu0 0.0
        %550 = vmatpush1.msra.mxu0 %v406
        %551 = vmatprep.subr.mxu0 0.0
        %552 = vmatpush1.msra.mxu0 %v405
        %553 = vmatprep.subr.mxu0 0.0
        %554 = vmatpush1.msra.mxu0 %v404
        %555 = vmatprep.subr.mxu0 0.0
        %556 = vmatpush1.msra.mxu0 %v403
        %557 = vmatprep.subr.mxu0 0.0
        %558 = vmatpush1.msra.mxu0 %v402
        %559 = vmatprep.subr.mxu0 0.0
        %560 = vmatpush1.msra.mxu0 %v401
        %561 = vmatprep.subr.mxu0 0.0
        %562 = vmatpush1.msra.mxu0 %v400
        %563 = vmatprep.subr.mxu0 0.0
        %564 = vmatpush2.msra.mxu0 0.0
        %565 = vmatprep.subr.mxu0 0.0
        %566 = vmatpush2.msra.mxu0 0.0
        %567 = vmatprep.subr.mxu0 0.0
        %568 = vmatpush2.msra.mxu0 0.0
        %569 = vmatprep.subr.mxu0 0.0
        %570 = vmatpush2.msra.mxu0 0.0
        %571 = vmatprep.subr.mxu0 0.0
        %572 = vmatpush2.msra.mxu0 0.0
        %573 = vmatprep.subr.mxu0 0.0
        %574 = vmatpush2.msra.mxu0 0.0
        %575 = vmatprep.subr.mxu0 0.0
        %576 = vmatpush2.msra.mxu0 0.0
        %577 = vmatprep.subr.mxu0 0.0
        %578 = vmatpush2.msra.mxu0 0.0
        %579 = vmatprep.subr.mxu0 0.0
        %580 = vmatpush2.msra.mxu0 0.0
        %581 = vmatprep.subr.mxu0 0.0
        %582 = vmatpush2.msra.mxu0 0.0
        %583 = vmatprep.subr.mxu0 0.0
        %584 = vmatpush2.msra.mxu0 0.0
        %585 = vmatprep.subr.mxu0 0.0
        %586 = vmatpush2.msra.mxu0 0.0
        %587 = vmatprep.subr.mxu0 0.0
        %588 = vmatpush2.msra.mxu0 0.0
        %589 = vmatprep.subr.mxu0 0.0
        %590 = vmatpush2.msra.mxu0 0.0
        %591 = vmatprep.subr.mxu0 0.0
        %592 = vmatpush2.msra.mxu0 0.0
        %593 = vmatprep.subr.mxu0 0.0
        %594 = vmatpush2.msra.mxu0 0.0
        %595 = vmatprep.mubr.f32.mxu0 0.0
        %596 = vmatmul.mubr.f32.gmra.mxu0 %v526
        %v597 = vpop.f32.mrf.mxu0
        %v598 = vadd.f32 0.0, %v597
        %v599 = vpop.f32.mrf.mxu0
        %600 = vmatprep.mubr.f32.mxu0 0.0
        %601 = vmatmul.mubr.f32.gmra.mxu0 %v529
        %v602 = vpop.f32.mrf.mxu0
        %v603 = vadd.f32 0.0, %v602
        %v604 = vpop.f32.mrf.mxu0
        %605 = vdwg.mxu0
        %v606 = vld [vmem:[%s322] sm:$0xff]
        %v607 = vld [vmem:[%s322 + $0x8] sm:$0xff]
        %v608 = vadd.f32 %v606, %v598
        %v609 = vadd.f32 %v607, %v603
        %v610 = vlaneseq
        %v611 = vshrl.u32 %v610, 7
        %v612 = vsub.s32 0, %v611
        %v613 = vrot.slane %v414, %v612
        %v614 = vadd.f32 %v608, %v613
        %v615 = vadd.f32 %v609, %v613
        %v616 = vmax.f32 %v614, 0.0
        %v617 = vmax.f32 %v615, 0.0
        %v618 = vlaneseq
        %v619 = vshrl.u32 %v618, 7
        %v620 = vsub.s32 0, %v619
        %v621 = vrot.slane %v415, %v620
        %622 = vmatprep.subr.mxu0 0.0
        %623 = vmatpush1.msra.mxu0 %v351
        %624 = vmatprep.subr.mxu0 0.0
        %625 = vmatpush1.msra.mxu0 %v350
        %626 = vmatprep.subr.mxu0 0.0
        %627 = vmatpush1.msra.mxu0 %v349
        %628 = vmatprep.subr.mxu0 0.0
        %629 = vmatpush1.msra.mxu0 %v348
        %630 = vmatprep.subr.mxu0 0.0
        %631 = vmatpush1.msra.mxu0 %v347
        %632 = vmatprep.subr.mxu0 0.0
        %633 = vmatpush1.msra.mxu0 %v346
        %634 = vmatprep.subr.mxu0 0.0
        %635 = vmatpush1.msra.mxu0 %v345
        %636 = vmatprep.subr.mxu0 0.0
        %637 = vmatpush1.msra.mxu0 %v344
        %638 = vmatprep.subr.mxu0 0.0
        %639 = vmatpush1.msra.mxu0 %v343
        %640 = vmatprep.subr.mxu0 0.0
        %641 = vmatpush1.msra.mxu0 %v342
        %642 = vmatprep.subr.mxu0 0.0
        %643 = vmatpush1.msra.mxu0 %v341
        %644 = vmatprep.subr.mxu0 0.0
        %645 = vmatpush1.msra.mxu0 %v340
        %646 = vmatprep.subr.mxu0 0.0
        %647 = vmatpush1.msra.mxu0 %v339
        %648 = vmatprep.subr.mxu0 0.0
        %649 = vmatpush1.msra.mxu0 %v338
        %650 = vmatprep.subr.mxu0 0.0
        %651 = vmatpush1.msra.mxu0 %v337
        %652 = vmatprep.subr.mxu0 0.0
        %653 = vmatpush1.msra.mxu0 %v336
        %654 = vmatprep.subr.mxu0 0.0
        %655 = vmatpush2.msra.mxu0 0.0
        %656 = vmatprep.subr.mxu0 0.0
        %657 = vmatpush2.msra.mxu0 0.0
        %658 = vmatprep.subr.mxu0 0.0
        %659 = vmatpush2.msra.mxu0 0.0
        %660 = vmatprep.subr.mxu0 0.0
        %661 = vmatpush2.msra.mxu0 0.0
        %662 = vmatprep.subr.mxu0 0.0
        %663 = vmatpush2.msra.mxu0 0.0
        %664 = vmatprep.subr.mxu0 0.0
        %665 = vmatpush2.msra.mxu0 0.0
        %666 = vmatprep.subr.mxu0 0.0
        %667 = vmatpush2.msra.mxu0 0.0
        %668 = vmatprep.subr.mxu0 0.0
        %669 = vmatpush2.msra.mxu0 0.0
        %670 = vmatprep.subr.mxu0 0.0
        %671 = vmatpush2.msra.mxu0 0.0
        %672 = vmatprep.subr.mxu0 0.0
        %673 = vmatpush2.msra.mxu0 0.0
        %674 = vmatprep.subr.mxu0 0.0
        %675 = vmatpush2.msra.mxu0 0.0
        %676 = vmatprep.subr.mxu0 0.0
        %677 = vmatpush2.msra.mxu0 0.0
        %678 = vmatprep.subr.mxu0 0.0
        %679 = vmatpush2.msra.mxu0 0.0
        %680 = vmatprep.subr.mxu0 0.0
        %681 = vmatpush2.msra.mxu0 0.0
        %682 = vmatprep.subr.mxu0 0.0
        %683 = vmatpush2.msra.mxu0 0.0
        %684 = vmatprep.subr.mxu0 0.0
        %685 = vmatpush2.msra.mxu0 0.0
        %686 = vmatprep.mubr.f32.mxu0 0.0
        %687 = vmatmul.mubr.f32.gmra.mxu0 %v616
        %v688 = vpop.f32.mrf.mxu0
        %v689 = vadd.f32 %v621, %v688
        %v690 = vpop.f32.mrf.mxu0
        %691 = vmatprep.mubr.f32.mxu0 0.0
        %692 = vmatmul.mubr.f32.gmra.mxu0 %v617
        %v693 = vpop.f32.mrf.mxu0
        %v694 = vadd.f32 %v621, %v693
        %v695 = vpop.f32.mrf.mxu0
        %696 = vdwg.mxu0
        %v698 = vsel %vm432, %v426, 0
        %v701 = vsel %vm432, %v427, 0
        %703 = vmatprep.subr.mxu0 0.0
        %704 = vmatpush1.msra.mxu0 0.0
        %705 = vmatprep.subr.mxu0 0.0
        %706 = vmatpush1.msra.mxu0 0.0
        %707 = vmatprep.subr.mxu0 0.0
        %708 = vmatpush1.msra.mxu0 0.0
        %709 = vmatprep.subr.mxu0 0.0
        %710 = vmatpush1.msra.mxu0 0.0
        %711 = vmatprep.subr.mxu0 0.0
        %712 = vmatpush1.msra.mxu0 0.0
        %713 = vmatprep.subr.mxu0 0.0
        %714 = vmatpush1.msra.mxu0 0.0
        %715 = vmatprep.subr.mxu0 0.0
        %716 = vmatpush1.msra.mxu0 0.0
        %717 = vmatprep.subr.mxu0 0.0
        %718 = vmatpush1.msra.mxu0 0.0
        %719 = vmatprep.subr.mxu0 0.0
        %720 = vmatpush1.msra.mxu0 0.0
        %721 = vmatprep.subr.mxu0 0.0
        %722 = vmatpush1.msra.mxu0 0.0
        %723 = vmatprep.subr.mxu0 0.0
        %724 = vmatpush1.msra.mxu0 0.0
        %725 = vmatprep.subr.mxu0 0.0
        %726 = vmatpush1.msra.mxu0 0.0
        %727 = vmatprep.subr.mxu0 0.0
        %728 = vmatpush1.msra.mxu0 0.0
        %729 = vmatprep.subr.mxu0 0.0
        %730 = vmatpush1.msra.mxu0 0.0
        %731 = vmatprep.subr.mxu0 0.0
        %732 = vmatpush1.msra.mxu0 0.0
        %733 = vmatprep.subr.mxu0 0.0
        %734 = vmatpush1.msra.mxu0 %v409
        %735 = vmatprep.subr.mxu0 0.0
        %736 = vmatpush2.msra.mxu0 0.0
        %737 = vmatprep.subr.mxu0 0.0
        %738 = vmatpush2.msra.mxu0 0.0
        %739 = vmatprep.subr.mxu0 0.0
        %740 = vmatpush2.msra.mxu0 0.0
        %741 = vmatprep.subr.mxu0 0.0
        %742 = vmatpush2.msra.mxu0 0.0
        %743 = vmatprep.subr.mxu0 0.0
        %744 = vmatpush2.msra.mxu0 0.0
        %745 = vmatprep.subr.mxu0 0.0
        %746 = vmatpush2.msra.mxu0 0.0
        %747 = vmatprep.subr.mxu0 0.0
        %748 = vmatpush2.msra.mxu0 0.0
        %749 = vmatprep.subr.mxu0 0.0
        %750 = vmatpush2.msra.mxu0 0.0
        %751 = vmatprep.subr.mxu0 0.0
        %752 = vmatpush2.msra.mxu0 0.0
        %753 = vmatprep.subr.mxu0 0.0
        %754 = vmatpush2.msra.mxu0 0.0
        %755 = vmatprep.subr.mxu0 0.0
        %756 = vmatpush2.msra.mxu0 0.0
        %757 = vmatprep.subr.mxu0 0.0
        %758 = vmatpush2.msra.mxu0 0.0
        %759 = vmatprep.subr.mxu0 0.0
        %760 = vmatpush2.msra.mxu0 0.0
        %761 = vmatprep.subr.mxu0 0.0
        %762 = vmatpush2.msra.mxu0 0.0
        %763 = vmatprep.subr.mxu0 0.0
        %764 = vmatpush2.msra.mxu0 0.0
        %765 = vmatprep.subr.mxu0 0.0
        %766 = vmatpush2.msra.mxu0 0.0
        %767 = vmatprep.mubr.f32.mxu0 0.0
        %768 = vmatmul.mubr.f32.gmra.mxu0 %v698
        %v769 = vpop.f32.mrf.mxu0
        %v770 = vadd.f32 0.0, %v769
        %v771 = vpop.f32.mrf.mxu0
        %772 = vmatprep.mubr.f32.mxu0 0.0
        %773 = vmatmul.mubr.f32.gmra.mxu0 %v701
        %v774 = vpop.f32.mrf.mxu0
        %v775 = vadd.f32 0.0, %v774
        %v776 = vpop.f32.mrf.mxu0
        %777 = vdwg.mxu0
        %v778 = vld [vmem:[%s328] sm:$0xff]
        %v779 = vld [vmem:[%s328 + $0x8] sm:$0xff]
        %vm780 = vcmask 130048
        %v782 = vsel %vm780, %v778, 0
        %v785 = vsel %vm780, %v779, 0
        %787 = vmatprep.subr.mxu0 0.0
        %788 = vmatpush1.msra.mxu0 0.0
        %789 = vmatprep.subr.mxu0 0.0
        %790 = vmatpush1.msra.mxu0 0.0
        %791 = vmatprep.subr.mxu0 0.0
        %792 = vmatpush1.msra.mxu0 0.0
        %793 = vmatprep.subr.mxu0 0.0
        %794 = vmatpush1.msra.mxu0 0.0
        %795 = vmatprep.subr.mxu0 0.0
        %796 = vmatpush1.msra.mxu0 0.0
        %797 = vmatprep.subr.mxu0 0.0
        %798 = vmatpush1.msra.mxu0 0.0
        %799 = vmatprep.subr.mxu0 0.0
        %800 = vmatpush1.msra.mxu0 0.0
        %801 = vmatprep.subr.mxu0 0.0
        %802 = vmatpush1.msra.mxu0 0.0
        %803 = vmatprep.subr.mxu0 0.0
        %804 = vmatpush1.msra.mxu0 0.0
        %805 = vmatprep.subr.mxu0 0.0
        %806 = vmatpush1.msra.mxu0 0.0
        %807 = vmatprep.subr.mxu0 0.0
        %808 = vmatpush1.msra.mxu0 0.0
        %809 = vmatprep.subr.mxu0 0.0
        %810 = vmatpush1.msra.mxu0 0.0
        %811 = vmatprep.subr.mxu0 0.0
        %812 = vmatpush1.msra.mxu0 0.0
        %813 = vmatprep.subr.mxu0 0.0
        %814 = vmatpush1.msra.mxu0 0.0
        %815 = vmatprep.subr.mxu0 0.0
        %816 = vmatpush1.msra.mxu0 %v411
        %817 = vmatprep.subr.mxu0 0.0
        %818 = vmatpush1.msra.mxu0 %v410
        %819 = vmatprep.subr.mxu0 0.0
        %820 = vmatpush2.msra.mxu0 0.0
        %821 = vmatprep.subr.mxu0 0.0
        %822 = vmatpush2.msra.mxu0 0.0
        %823 = vmatprep.subr.mxu0 0.0
        %824 = vmatpush2.msra.mxu0 0.0
        %825 = vmatprep.subr.mxu0 0.0
        %826 = vmatpush2.msra.mxu0 0.0
        %827 = vmatprep.subr.mxu0 0.0
        %828 = vmatpush2.msra.mxu0 0.0
        %829 = vmatprep.subr.mxu0 0.0
        %830 = vmatpush2.msra.mxu0 0.0
        %831 = vmatprep.subr.mxu0 0.0
        %832 = vmatpush2.msra.mxu0 0.0
        %833 = vmatprep.subr.mxu0 0.0
        %834 = vmatpush2.msra.mxu0 0.0
        %835 = vmatprep.subr.mxu0 0.0
        %836 = vmatpush2.msra.mxu0 0.0
        %837 = vmatprep.subr.mxu0 0.0
        %838 = vmatpush2.msra.mxu0 0.0
        %839 = vmatprep.subr.mxu0 0.0
        %840 = vmatpush2.msra.mxu0 0.0
        %841 = vmatprep.subr.mxu0 0.0
        %842 = vmatpush2.msra.mxu0 0.0
        %843 = vmatprep.subr.mxu0 0.0
        %844 = vmatpush2.msra.mxu0 0.0
        %845 = vmatprep.subr.mxu0 0.0
        %846 = vmatpush2.msra.mxu0 0.0
        %847 = vmatprep.subr.mxu0 0.0
        %848 = vmatpush2.msra.mxu0 0.0
        %849 = vmatprep.subr.mxu0 0.0
        %850 = vmatpush2.msra.mxu0 0.0
        %851 = vmatprep.mubr.f32.mxu0 0.0
        %852 = vmatmul.mubr.f32.gmra.mxu0 %v782
        %v853 = vpop.f32.mrf.mxu0
        %v854 = vadd.f32 0.0, %v853
        %v855 = vpop.f32.mrf.mxu0
        %856 = vmatprep.mubr.f32.mxu0 0.0
        %857 = vmatmul.mubr.f32.gmra.mxu0 %v785
        %v858 = vpop.f32.mrf.mxu0
        %v859 = vadd.f32 0.0, %v858
        %v860 = vpop.f32.mrf.mxu0
        %861 = vdwg.mxu0
        %v862 = vmul.f32 %v770, %v854
        %v863 = vmul.f32 %v775, %v859
        %864 = vmatprep.subr.mxu0 0.0
        %865 = vmatpush1.msra.mxu0 %v367
        %866 = vmatprep.subr.mxu0 0.0
        %867 = vmatpush1.msra.mxu0 %v366
        %868 = vmatprep.subr.mxu0 0.0
        %869 = vmatpush1.msra.mxu0 %v365
        %870 = vmatprep.subr.mxu0 0.0
        %871 = vmatpush1.msra.mxu0 %v364
        %872 = vmatprep.subr.mxu0 0.0
        %873 = vmatpush1.msra.mxu0 %v363
        %874 = vmatprep.subr.mxu0 0.0
        %875 = vmatpush1.msra.mxu0 %v362
        %876 = vmatprep.subr.mxu0 0.0
        %877 = vmatpush1.msra.mxu0 %v361
        %878 = vmatprep.subr.mxu0 0.0
        %879 = vmatpush1.msra.mxu0 %v360
        %880 = vmatprep.subr.mxu0 0.0
        %881 = vmatpush1.msra.mxu0 %v359
        %882 = vmatprep.subr.mxu0 0.0
        %883 = vmatpush1.msra.mxu0 %v358
        %884 = vmatprep.subr.mxu0 0.0
        %885 = vmatpush1.msra.mxu0 %v357
        %886 = vmatprep.subr.mxu0 0.0
        %887 = vmatpush1.msra.mxu0 %v356
        %888 = vmatprep.subr.mxu0 0.0
        %889 = vmatpush1.msra.mxu0 %v355
        %890 = vmatprep.subr.mxu0 0.0
        %891 = vmatpush1.msra.mxu0 %v354
        %892 = vmatprep.subr.mxu0 0.0
        %893 = vmatpush1.msra.mxu0 %v353
        %894 = vmatprep.subr.mxu0 0.0
        %895 = vmatpush1.msra.mxu0 %v352
        %896 = vmatprep.subr.mxu0 0.0
        %897 = vmatpush2.msra.mxu0 0.0
        %898 = vmatprep.subr.mxu0 0.0
        %899 = vmatpush2.msra.mxu0 0.0
        %900 = vmatprep.subr.mxu0 0.0
        %901 = vmatpush2.msra.mxu0 0.0
        %902 = vmatprep.subr.mxu0 0.0
        %903 = vmatpush2.msra.mxu0 0.0
        %904 = vmatprep.subr.mxu0 0.0
        %905 = vmatpush2.msra.mxu0 0.0
        %906 = vmatprep.subr.mxu0 0.0
        %907 = vmatpush2.msra.mxu0 0.0
        %908 = vmatprep.subr.mxu0 0.0
        %909 = vmatpush2.msra.mxu0 0.0
        %910 = vmatprep.subr.mxu0 0.0
        %911 = vmatpush2.msra.mxu0 0.0
        %912 = vmatprep.subr.mxu0 0.0
        %913 = vmatpush2.msra.mxu0 0.0
        %914 = vmatprep.subr.mxu0 0.0
        %915 = vmatpush2.msra.mxu0 0.0
        %916 = vmatprep.subr.mxu0 0.0
        %917 = vmatpush2.msra.mxu0 0.0
        %918 = vmatprep.subr.mxu0 0.0
        %919 = vmatpush2.msra.mxu0 0.0
        %920 = vmatprep.subr.mxu0 0.0
        %921 = vmatpush2.msra.mxu0 0.0
        %922 = vmatprep.subr.mxu0 0.0
        %923 = vmatpush2.msra.mxu0 0.0
        %924 = vmatprep.subr.mxu0 0.0
        %925 = vmatpush2.msra.mxu0 0.0
        %926 = vmatprep.subr.mxu0 0.0
        %927 = vmatpush2.msra.mxu0 0.0
        %928 = vmatprep.mubr.f32.mxu0 0.0
        %929 = vmatmul.mubr.f32.gmra.mxu0 %v689
        %v930 = vpop.f32.mrf.mxu0
        %v931 = vadd.f32 %v862, %v930
        %v932 = vpop.f32.mrf.mxu0
        %933 = vmatprep.mubr.f32.mxu0 0.0
        %934 = vmatmul.mubr.f32.gmra.mxu0 %v694
        %v935 = vpop.f32.mrf.mxu0
        %v936 = vadd.f32 %v863, %v935
        %v937 = vpop.f32.mrf.mxu0
        %938 = vdwg.mxu0
        %v939 = vlaneseq
        %v940 = vshrl.u32 %v939, 7
        %v941 = vsub.s32 0, %v940
        %v942 = vrot.slane %v416, %v941
        %v943 = vadd.f32 %v931, %v942
        %v944 = vadd.f32 %v936, %v942
        %v945 = vmax.f32 %v943, 0.0
        %v946 = vmax.f32 %v944, 0.0
        %s948 = vtos %v419
        %v949 = vstv %s948
        %951 = vmatprep.subr.mxu0 0.0
        %952 = vmatpush1.msra.mxu0 %v383
        %953 = vmatprep.subr.mxu0 0.0
        %954 = vmatpush1.msra.mxu0 %v382
        %955 = vmatprep.subr.mxu0 0.0
        %956 = vmatpush1.msra.mxu0 %v381
        %957 = vmatprep.subr.mxu0 0.0
        %958 = vmatpush1.msra.mxu0 %v380
        %959 = vmatprep.subr.mxu0 0.0
        %960 = vmatpush1.msra.mxu0 %v379
        %961 = vmatprep.subr.mxu0 0.0
        %962 = vmatpush1.msra.mxu0 %v378
        %963 = vmatprep.subr.mxu0 0.0
        %964 = vmatpush1.msra.mxu0 %v377
        %965 = vmatprep.subr.mxu0 0.0
        %966 = vmatpush1.msra.mxu0 %v376
        %967 = vmatprep.subr.mxu0 0.0
        %968 = vmatpush1.msra.mxu0 %v375
        %969 = vmatprep.subr.mxu0 0.0
        %970 = vmatpush1.msra.mxu0 %v374
        %971 = vmatprep.subr.mxu0 0.0
        %972 = vmatpush1.msra.mxu0 %v373
        %973 = vmatprep.subr.mxu0 0.0
        %974 = vmatpush1.msra.mxu0 %v372
        %975 = vmatprep.subr.mxu0 0.0
        %976 = vmatpush1.msra.mxu0 %v371
        %977 = vmatprep.subr.mxu0 0.0
        %978 = vmatpush1.msra.mxu0 %v370
        %979 = vmatprep.subr.mxu0 0.0
        %980 = vmatpush1.msra.mxu0 %v369
        %981 = vmatprep.subr.mxu0 0.0
        %982 = vmatpush1.msra.mxu0 %v368
        %983 = vmatprep.subr.mxu0 0.0
        %984 = vmatpush2.msra.mxu0 0.0
        %985 = vmatprep.subr.mxu0 0.0
        %986 = vmatpush2.msra.mxu0 0.0
        %987 = vmatprep.subr.mxu0 0.0
        %988 = vmatpush2.msra.mxu0 0.0
        %989 = vmatprep.subr.mxu0 0.0
        %990 = vmatpush2.msra.mxu0 0.0
        %991 = vmatprep.subr.mxu0 0.0
        %992 = vmatpush2.msra.mxu0 0.0
        %993 = vmatprep.subr.mxu0 0.0
        %994 = vmatpush2.msra.mxu0 0.0
        %995 = vmatprep.subr.mxu0 0.0
        %996 = vmatpush2.msra.mxu0 0.0
        %997 = vmatprep.subr.mxu0 0.0
        %998 = vmatpush2.msra.mxu0 0.0
        %999 = vmatprep.subr.mxu0 0.0
        %1000 = vmatpush2.msra.mxu0 0.0
        %1001 = vmatprep.subr.mxu0 0.0
        %1002 = vmatpush2.msra.mxu0 0.0
        %1003 = vmatprep.subr.mxu0 0.0
        %1004 = vmatpush2.msra.mxu0 0.0
        %1005 = vmatprep.subr.mxu0 0.0
        %1006 = vmatpush2.msra.mxu0 0.0
        %1007 = vmatprep.subr.mxu0 0.0
        %1008 = vmatpush2.msra.mxu0 0.0
        %1009 = vmatprep.subr.mxu0 0.0
        %1010 = vmatpush2.msra.mxu0 0.0
        %1011 = vmatprep.subr.mxu0 0.0
        %1012 = vmatpush2.msra.mxu0 0.0
        %1013 = vmatprep.subr.mxu0 0.0
        %1014 = vmatpush2.msra.mxu0 0.0
        %1015 = vmatprep.mubr.f32.mxu0 0.0
        %1016 = vmatmul.mubr.f32.gmra.mxu0 %v945
        %v1017 = vpop.f32.mrf.mxu0
        %v1018 = vadd.f32 %v949, %v1017
        %v1019 = vpop.f32.mrf.mxu0
        %1020 = vmatprep.mubr.f32.mxu0 0.0
        %1021 = vmatmul.mubr.f32.gmra.mxu0 %v946
        %v1022 = vpop.f32.mrf.mxu0
        %v1023 = vadd.f32 %v949, %v1022
        %v1024 = vpop.f32.mrf.mxu0
        %1025 = vdwg.mxu0
        %v1026 = vmul.f32 %v1018, 1.442695
        %v1027 = vpow.pop %v1026
        %v1028 = vmul.f32 %v1023, 1.442695
        %v1029 = vpow.pop %v1028
        %v1030 = vmul.f32 %v1027, %v426
        %v1031 = vmul.f32 %v1029, %v427
        %v1032 = vsel %vm432, %v1030, 0.0
        %1033 = vadd.xlane.f32.xlu0 %v1032
        %v1034 = vpop.xlane.xlu0 %1033
        %v1035 = vsel %vm432, %v1031, 0.0
        %1036 = vadd.xlane.f32.xlu0 %v1035
        %v1037 = vpop.xlane.xlu0 %1036
        %v1038 = vadd.f32 %v1034, 1e-10
        %v1039 = vadd.f32 %v1037, 1e-10
        %v1040 = vrcp.pop %v1038
        %v1041 = vmul.f32 %v1030, %v1040
        %v1042 = vrcp.pop %v1039
        %v1043 = vmul.f32 %v1031, %v1042
        %v1045 = vsel %vm432, %v1041, 0
        %v1048 = vsel %vm432, %v1043, 0
        %1050 = vmatprep.subr.mxu0 0.0
        %1051 = vmatpush1.msra.mxu0 0.0
        %1052 = vmatprep.subr.mxu0 0.0
        %1053 = vmatpush1.msra.mxu0 0.0
        %1054 = vmatprep.subr.mxu0 0.0
        %1055 = vmatpush1.msra.mxu0 0.0
        %1056 = vmatprep.subr.mxu0 0.0
        %1057 = vmatpush1.msra.mxu0 0.0
        %1058 = vmatprep.subr.mxu0 0.0
        %1059 = vmatpush1.msra.mxu0 0.0
        %1060 = vmatprep.subr.mxu0 0.0
        %1061 = vmatpush1.msra.mxu0 0.0
        %1062 = vmatprep.subr.mxu0 0.0
        %1063 = vmatpush1.msra.mxu0 0.0
        %1064 = vmatprep.subr.mxu0 0.0
        %1065 = vmatpush1.msra.mxu0 0.0
        %1066 = vmatprep.subr.mxu0 0.0
        %1067 = vmatpush1.msra.mxu0 0.0
        %1068 = vmatprep.subr.mxu0 0.0
        %1069 = vmatpush1.msra.mxu0 0.0
        %1070 = vmatprep.subr.mxu0 0.0
        %1071 = vmatpush1.msra.mxu0 0.0
        %1072 = vmatprep.subr.mxu0 0.0
        %1073 = vmatpush1.msra.mxu0 0.0
        %1074 = vmatprep.subr.mxu0 0.0
        %1075 = vmatpush1.msra.mxu0 0.0
        %1076 = vmatprep.subr.mxu0 0.0
        %1077 = vmatpush1.msra.mxu0 0.0
        %1078 = vmatprep.subr.mxu0 0.0
        %1079 = vmatpush1.msra.mxu0 0.0
        %1080 = vmatprep.subr.mxu0 0.0
        %1081 = vmatpush1.msra.mxu0 %v409
        %1082 = vmatprep.subr.mxu0 0.0
        %1083 = vmatpush2.msra.mxu0 0.0
        %1084 = vmatprep.subr.mxu0 0.0
        %1085 = vmatpush2.msra.mxu0 0.0
        %1086 = vmatprep.subr.mxu0 0.0
        %1087 = vmatpush2.msra.mxu0 0.0
        %1088 = vmatprep.subr.mxu0 0.0
        %1089 = vmatpush2.msra.mxu0 0.0
        %1090 = vmatprep.subr.mxu0 0.0
        %1091 = vmatpush2.msra.mxu0 0.0
        %1092 = vmatprep.subr.mxu0 0.0
        %1093 = vmatpush2.msra.mxu0 0.0
        %1094 = vmatprep.subr.mxu0 0.0
        %1095 = vmatpush2.msra.mxu0 0.0
        %1096 = vmatprep.subr.mxu0 0.0
        %1097 = vmatpush2.msra.mxu0 0.0
        %1098 = vmatprep.subr.mxu0 0.0
        %1099 = vmatpush2.msra.mxu0 0.0
        %1100 = vmatprep.subr.mxu0 0.0
        %1101 = vmatpush2.msra.mxu0 0.0
        %1102 = vmatprep.subr.mxu0 0.0
        %1103 = vmatpush2.msra.mxu0 0.0
        %1104 = vmatprep.subr.mxu0 0.0
        %1105 = vmatpush2.msra.mxu0 0.0
        %1106 = vmatprep.subr.mxu0 0.0
        %1107 = vmatpush2.msra.mxu0 0.0
        %1108 = vmatprep.subr.mxu0 0.0
        %1109 = vmatpush2.msra.mxu0 0.0
        %1110 = vmatprep.subr.mxu0 0.0
        %1111 = vmatpush2.msra.mxu0 0.0
        %1112 = vmatprep.subr.mxu0 0.0
        %1113 = vmatpush2.msra.mxu0 0.0
        %1114 = vmatprep.mubr.f32.mxu0 0.0
        %1115 = vmatmul.mubr.f32.gmra.mxu0 %v1045
        %v1116 = vpop.f32.mrf.mxu0
        %v1117 = vadd.f32 0.0, %v1116
        %v1118 = vpop.f32.mrf.mxu0
        %1119 = vmatprep.mubr.f32.mxu0 0.0
        %1120 = vmatmul.mubr.f32.gmra.mxu0 %v1048
        %v1121 = vpop.f32.mrf.mxu0
        %v1122 = vadd.f32 0.0, %v1121
        %v1123 = vpop.f32.mrf.mxu0
        %1124 = vdwg.mxu0
        %v1125 = vmul.f32 %v1117, %v689
        %v1126 = vmul.f32 %v1122, %v694
        %1127 = vmatprep.subr.mxu0 0.0
        %1128 = vmatpush1.msra.mxu0 %v399
        %1129 = vmatprep.subr.mxu0 0.0
        %1130 = vmatpush1.msra.mxu0 %v398
        %1131 = vmatprep.subr.mxu0 0.0
        %1132 = vmatpush1.msra.mxu0 %v397
        %1133 = vmatprep.subr.mxu0 0.0
        %1134 = vmatpush1.msra.mxu0 %v396
        %1135 = vmatprep.subr.mxu0 0.0
        %1136 = vmatpush1.msra.mxu0 %v395
        %1137 = vmatprep.subr.mxu0 0.0
        %1138 = vmatpush1.msra.mxu0 %v394
        %1139 = vmatprep.subr.mxu0 0.0
        %1140 = vmatpush1.msra.mxu0 %v393
        %1141 = vmatprep.subr.mxu0 0.0
        %1142 = vmatpush1.msra.mxu0 %v392
        %1143 = vmatprep.subr.mxu0 0.0
        %1144 = vmatpush1.msra.mxu0 %v391
        %1145 = vmatprep.subr.mxu0 0.0
        %1146 = vmatpush1.msra.mxu0 %v390
        %1147 = vmatprep.subr.mxu0 0.0
        %1148 = vmatpush1.msra.mxu0 %v389
        %1149 = vmatprep.subr.mxu0 0.0
        %1150 = vmatpush1.msra.mxu0 %v388
        %1151 = vmatprep.subr.mxu0 0.0
        %1152 = vmatpush1.msra.mxu0 %v387
        %1153 = vmatprep.subr.mxu0 0.0
        %1154 = vmatpush1.msra.mxu0 %v386
        %1155 = vmatprep.subr.mxu0 0.0
        %1156 = vmatpush1.msra.mxu0 %v385
        %1157 = vmatprep.subr.mxu0 0.0
        %1158 = vmatpush1.msra.mxu0 %v384
        %1159 = vmatprep.subr.mxu0 0.0
        %1160 = vmatpush2.msra.mxu0 0.0
        %1161 = vmatprep.subr.mxu0 0.0
        %1162 = vmatpush2.msra.mxu0 0.0
        %1163 = vmatprep.subr.mxu0 0.0
        %1164 = vmatpush2.msra.mxu0 0.0
        %1165 = vmatprep.subr.mxu0 0.0
        %1166 = vmatpush2.msra.mxu0 0.0
        %1167 = vmatprep.subr.mxu0 0.0
        %1168 = vmatpush2.msra.mxu0 0.0
        %1169 = vmatprep.subr.mxu0 0.0
        %1170 = vmatpush2.msra.mxu0 0.0
        %1171 = vmatprep.subr.mxu0 0.0
        %1172 = vmatpush2.msra.mxu0 0.0
        %1173 = vmatprep.subr.mxu0 0.0
        %1174 = vmatpush2.msra.mxu0 0.0
        %1175 = vmatprep.subr.mxu0 0.0
        %1176 = vmatpush2.msra.mxu0 0.0
        %1177 = vmatprep.subr.mxu0 0.0
        %1178 = vmatpush2.msra.mxu0 0.0
        %1179 = vmatprep.subr.mxu0 0.0
        %1180 = vmatpush2.msra.mxu0 0.0
        %1181 = vmatprep.subr.mxu0 0.0
        %1182 = vmatpush2.msra.mxu0 0.0
        %1183 = vmatprep.subr.mxu0 0.0
        %1184 = vmatpush2.msra.mxu0 0.0
        %1185 = vmatprep.subr.mxu0 0.0
        %1186 = vmatpush2.msra.mxu0 0.0
        %1187 = vmatprep.subr.mxu0 0.0
        %1188 = vmatpush2.msra.mxu0 0.0
        %1189 = vmatprep.subr.mxu0 0.0
        %1190 = vmatpush2.msra.mxu0 0.0
        %1191 = vmatprep.mubr.f32.mxu0 0.0
        %1192 = vmatmul.mubr.f32.gmra.mxu0 %v1125
        %v1193 = vpop.f32.mrf.mxu0
        %v1194 = vadd.f32 0.0, %v1193
        %v1195 = vpop.f32.mrf.mxu0
        %1196 = vmatprep.mubr.f32.mxu0 0.0
        %1197 = vmatmul.mubr.f32.gmra.mxu0 %v1126
        %v1198 = vpop.f32.mrf.mxu0
        %v1199 = vadd.f32 0.0, %v1198
        %v1200 = vpop.f32.mrf.mxu0
        %1201 = vdwg.mxu0
        %v1202 = vlaneseq
        %v1203 = vshrl.u32 %v1202, 7
        %v1204 = vsub.s32 0, %v1203
        %v1205 = vrot.slane %v418, %v1204
        %v1207 = vsel %vm780, %v1194, 0
        %v1210 = vsel %vm780, %v1199, 0
        %1212 = vmatprep.subr.mxu0 0.0
        %1213 = vmatpush1.msra.mxu0 0.0
        %1214 = vmatprep.subr.mxu0 0.0
        %1215 = vmatpush1.msra.mxu0 0.0
        %1216 = vmatprep.subr.mxu0 0.0
        %1217 = vmatpush1.msra.mxu0 0.0
        %1218 = vmatprep.subr.mxu0 0.0
        %1219 = vmatpush1.msra.mxu0 0.0
        %1220 = vmatprep.subr.mxu0 0.0
        %1221 = vmatpush1.msra.mxu0 0.0
        %1222 = vmatprep.subr.mxu0 0.0
        %1223 = vmatpush1.msra.mxu0 0.0
        %1224 = vmatprep.subr.mxu0 0.0
        %1225 = vmatpush1.msra.mxu0 0.0
        %1226 = vmatprep.subr.mxu0 0.0
        %1227 = vmatpush1.msra.mxu0 0.0
        %1228 = vmatprep.subr.mxu0 0.0
        %1229 = vmatpush1.msra.mxu0 0.0
        %1230 = vmatprep.subr.mxu0 0.0
        %1231 = vmatpush1.msra.mxu0 0.0
        %1232 = vmatprep.subr.mxu0 0.0
        %1233 = vmatpush1.msra.mxu0 0.0
        %1234 = vmatprep.subr.mxu0 0.0
        %1235 = vmatpush1.msra.mxu0 0.0
        %1236 = vmatprep.subr.mxu0 0.0
        %1237 = vmatpush1.msra.mxu0 0.0
        %1238 = vmatprep.subr.mxu0 0.0
        %1239 = vmatpush1.msra.mxu0 0.0
        %1240 = vmatprep.subr.mxu0 0.0
        %1241 = vmatpush1.msra.mxu0 %v413
        %1242 = vmatprep.subr.mxu0 0.0
        %1243 = vmatpush1.msra.mxu0 %v412
        %1244 = vmatprep.subr.mxu0 0.0
        %1245 = vmatpush2.msra.mxu0 0.0
        %1246 = vmatprep.subr.mxu0 0.0
        %1247 = vmatpush2.msra.mxu0 0.0
        %1248 = vmatprep.subr.mxu0 0.0
        %1249 = vmatpush2.msra.mxu0 0.0
        %1250 = vmatprep.subr.mxu0 0.0
        %1251 = vmatpush2.msra.mxu0 0.0
        %1252 = vmatprep.subr.mxu0 0.0
        %1253 = vmatpush2.msra.mxu0 0.0
        %1254 = vmatprep.subr.mxu0 0.0
        %1255 = vmatpush2.msra.mxu0 0.0
        %1256 = vmatprep.subr.mxu0 0.0
        %1257 = vmatpush2.msra.mxu0 0.0
        %1258 = vmatprep.subr.mxu0 0.0
        %1259 = vmatpush2.msra.mxu0 0.0
        %1260 = vmatprep.subr.mxu0 0.0
        %1261 = vmatpush2.msra.mxu0 0.0
        %1262 = vmatprep.subr.mxu0 0.0
        %1263 = vmatpush2.msra.mxu0 0.0
        %1264 = vmatprep.subr.mxu0 0.0
        %1265 = vmatpush2.msra.mxu0 0.0
        %1266 = vmatprep.subr.mxu0 0.0
        %1267 = vmatpush2.msra.mxu0 0.0
        %1268 = vmatprep.subr.mxu0 0.0
        %1269 = vmatpush2.msra.mxu0 0.0
        %1270 = vmatprep.subr.mxu0 0.0
        %1271 = vmatpush2.msra.mxu0 0.0
        %1272 = vmatprep.subr.mxu0 0.0
        %1273 = vmatpush2.msra.mxu0 0.0
        %1274 = vmatprep.subr.mxu0 0.0
        %1275 = vmatpush2.msra.mxu0 0.0
        %1276 = vmatprep.mubr.f32.mxu0 0.0
        %1277 = vmatmul.mubr.f32.gmra.mxu0 %v1207
        %v1278 = vpop.f32.mrf.mxu0
        %v1279 = vadd.f32 %v1205, %v1278
        %v1280 = vpop.f32.mrf.mxu0
        %1281 = vmatprep.mubr.f32.mxu0 0.0
        %1282 = vmatmul.mubr.f32.gmra.mxu0 %v1210
        %v1283 = vpop.f32.mrf.mxu0
        %v1284 = vadd.f32 %v1205, %v1283
        %v1285 = vpop.f32.mrf.mxu0
        %1286 = vdwg.mxu0
        %v1287 = vmax.f32 %v1279, 0.0
        %v1288 = vmax.f32 %v1284, 0.0
        %1289 = vst.msk [vmem:[%s334] sm:$0xff] %vm780, %v1287
        %1290 = vst.msk [vmem:[%s334 + $0x8] sm:$0xff] %vm780, %v1288
        %s1291 = smul.u32 2, %s18
        %p1292 = scmp.lt.s32.totalorder %s1291, 3
        %s1293 = scalar_select %p1292, %s1291, 3
        %s1294 = smul.addr %s1293, 8
        %s1295 = scalar_lea.vmem %s6, %s1294
        // Predicated region
        $region49: #{tpu_custom_call.1} parent=43 // pred_check
          %p1296 = pneg %p182
        $region50: #{tpu_custom_call.1} parent=43 // pred_check_branch
          %1298 = sbr.rel (%p1296) target = $region52
        $region51: #{tpu_custom_call.1} parent=43 // pred_region
          %s1299 = smul.u32 2, %s18
        $region52: #{tpu_custom_call.1} parent=43 // pred_fallthru
          _
      $region44: #{tpu_custom_call.1} parent=5 // pred_fallthru
        _
      %p1300 = scmp.le.s32.totalorder 2, %s13
      // Predicated region
      $region53: #{tpu_custom_call.1} parent=5 // pred_check
        %p1301 = pneg %p1300
      $region54: #{tpu_custom_call.1} parent=5 // pred_check_branch
        %1303 = sbr.rel (%p1301) target = $region56
      $region55: #{tpu_custom_call.1} parent=5 // pred_region
        %s1304 = ssub.s32 %s13, 2
        // Predicated region
        $region57: #{tpu_custom_call.1} parent=55 // pred_check
          %p1305 = pneg %p188
        $region58: #{tpu_custom_call.1} parent=55 // pred_check_branch
          %1307 = sbr.rel (%p1305) target = $region60
        $region59: #{tpu_custom_call.1} parent=55 // pred_region
          %s1308 = smul.u32 2, %s19
          %p1309 = scmp.lt.s32.totalorder %s1308, 3
          %s1310 = scalar_select %p1309, %s1308, 3
          %s1311 = smul.addr %s1310, 8
          %s1312 = scalar_lea.vmem %s6, %s1311
        $region60: #{tpu_custom_call.1} parent=55 // pred_fallthru
          _
      $region56: #{tpu_custom_call.1} parent=5 // pred_fallthru
        _
    $region6: #{tpu_custom_call.1} parent=1 // loop_footer
      %s17 = sadd.s32 1, %s13
    $region7: #{tpu_custom_call.1} parent=1 // loop_footer_branch
      %12 = sbr.rel target = $region3
    $region8: #{tpu_custom_call.1} parent=1 // loop_exit
      _
    %1313 = vsyncpa [#allocation3], 1
    %s1314 = scalar_lea.sflag [#allocation3], 1
    %1315 = vsyncpa %s1314, 1

</llo_original>
